<compile_context>
chip_gen: v6e
topology: v6e:2x2x1
jax: 0.10.0
libtpu: 0.0.40
codegen_flags: <defaults>
</compile_context>

<pallas_src>
import jax
import jax.numpy as jnp
from jax.experimental import pallas as pl
from jax.experimental.pallas import tpu as pltpu

IN_DIM = 768
H1 = 512
H2 = 32
OUT = 1
_LANES = 128


def _round_up(n, m):
    return ((n + m - 1) // m) * m


def _hw_config():
    """Returns (default batch tile, VMEM scoped limit bytes) by TPU generation."""
    try:
        kind = jax.devices()[0].device_kind.lower()
    except Exception:
        kind = ""
    if ("v5" in kind) or ("v6" in kind):
        # 128 MiB physical VMEM: bigger tiles + higher scoped limit.
        return 4096, 64 * 1024 * 1024
    # v7x (64 MiB VMEM per TC) or unknown: conservative settings.
    return 2048, 32 * 1024 * 1024


def mlp_kernel(x_ref, w1_ref, b1_ref, w2_ref, b2_ref, w3_ref, b3_ref, o_ref):
    cd = w1_ref.dtype
    # In-kernel cast to the MXU compute dtype (no-op when the caller already
    # passes bf16 activations).  bf16 MXU inputs, f32 accumulation; bias-add /
    # ReLU stay f32 on the VPU (v5e has no bf16 VPU).
    x = x_ref[...].astype(cd)

    # Linear(768->512) + ReLU          (Dropout(0.2) is identity at inference)
    h1 = jnp.dot(x, w1_ref[...], preferred_element_type=jnp.float32)
    h1 = jnp.maximum(h1 + b1_ref[...], 0.0)

    # Linear(512->32) + ReLU           (narrow-N MXU op; hidden under DMA)
    h2 = jnp.dot(h1.astype(cd), w2_ref[...], preferred_element_type=jnp.float32)
    h2 = jnp.maximum(h2 + b2_ref[...], 0.0)

    # Linear(32->1), computed as w3_rows @ h2^T (bf16 in, f32 acc) so the
    # per-tile result comes out lane-dense:
    #   out[r, j] = sum_k w3_rows[r, k] * h2[j, k]   (rows replicated)
    out = jax.lax.dot_general(
        w3_ref[...], h2.astype(w3_ref.dtype),
        dimension_numbers=(((1,), (1,)), ((), ())),
        preferred_element_type=jnp.float32,
    )                                                    # (8, tb)
    o_ref[...] = (out[0:1, :] + b3_ref[...]).astype(o_ref.dtype)   # (1, tb)


def multimodal_forward(x, params, *, tb=None, compute_dtype=jnp.bfloat16,
                       vmem_limit_bytes=None):
    """x: [B, 768] (f32 or bf16). params: dict of [in,out] weights. Returns [B, 1] f32."""
    B, D = x.shape
    assert D == IN_DIM
    tb_default, vmem_default = _hw_config()
    if tb is None:
        tb = tb_default
    if vmem_limit_bytes is None:
        vmem_limit_bytes = vmem_default

    # Batch tile: multiple of 128 (lane-dense output), clamped for tiny batches,
    # and capped near B/2 so batches > 128 rows always produce >= 2 parallel
    # tiles (so v7x's second TensorCore is never idle).
    tb_req = _round_up(tb, _LANES)
    half_cap = max(_LANES, _round_up((B + 1) // 2, _LANES))
    tb_eff = min(tb_req, half_cap)
    B_pad = _round_up(B, tb_eff)
    num_tiles = B_pad // tb_eff

    # Zero-pad only the ragged tail tile (no dtype cast here — that happens
    # in-kernel).  Batches already a multiple of tb_eff avoid this copy; large
    # callers should prefer batch sizes that are multiples of 128.
    xp = x if B_pad == B else jnp.pad(x, ((0, B_pad - B), (0, 0)))

    w1 = params["w1"].astype(compute_dtype)              # [768, 512]
    w2 = params["w2"].astype(compute_dtype)              # [512,  32]
    b1 = params["b1"].astype(jnp.float32)                # [1, 512]
    b2 = params["b2"].astype(jnp.float32)                # [1,  32]
    # Final layer: 8 replicated rows of w3^T (bf16) so the NT dot has a
    # non-degenerate (8, 32) LHS; its bias stays f32.
    w3r = jnp.tile(params["w3"].reshape(1, H2).astype(compute_dtype), (8, 1))
    b3 = params["b3"].reshape(1, 1).astype(jnp.float32)

    grid = (num_tiles,)
    in_specs = [
        pl.BlockSpec((tb_eff, IN_DIM), lambda i: (i, 0)),
        # Weight / bias blocks have constant index maps (grid-invariant):
        # Pallas does not re-copy them across grid steps.
        pl.BlockSpec((IN_DIM, H1), lambda i: (0, 0)),
        pl.BlockSpec((1, H1), lambda i: (0, 0)),
        pl.BlockSpec((H1, H2), lambda i: (0, 0)),
        pl.BlockSpec((1, H2), lambda i: (0, 0)),
        pl.BlockSpec((8, H2), lambda i: (0, 0)),
        pl.BlockSpec((1, 1), lambda i: (0, 0)),
    ]
    # Lane-dense output: one (1, tb) row per grid step of a (1, B_pad) array.
    out_specs = pl.BlockSpec((1, tb_eff), lambda i: (0, i))

    out = pl.pallas_call(
        mlp_kernel,
        out_shape=jax.ShapeDtypeStruct((1, B_pad), jnp.float32),
        grid_spec=pltpu.PrefetchScalarGridSpec(
            num_scalar_prefetch=0,
            grid=grid,
            in_specs=in_specs,
            out_specs=out_specs,
        ),
        compiler_params=pltpu.CompilerParams(
            dimension_semantics=("parallel",),
            vmem_limit_bytes=vmem_limit_bytes,
        ),
    )(xp, w1, b1, w2, b2, w3r, b3)

    # Padded rows carry nonzero junk; slice them off before any downstream use.
    return out.reshape(B_pad, 1)[:B]


def init_params(key):
    """Deterministic synthetic init (the module's checkpoint is not loaded)."""
    # TODO(synk): real deployment would load 'concat_best.ckpt' weights here.
    k1, k2, k3, kb1, kb2, kb3 = jax.random.split(key, 6)
    # Stored as [in, out] (transposed relative to PyTorch's [out, in]).
    w1 = jax.random.normal(k1, (IN_DIM, H1), jnp.float32) * 0.02
    w2 = jax.random.normal(k2, (H1, H2), jnp.float32) * 0.02
    w3 = jax.random.normal(k3, (H2, OUT), jnp.float32) * 0.02
    b1 = jax.random.normal(kb1, (1, H1), jnp.float32) * 0.01
    b2 = jax.random.normal(kb2, (1, H2), jnp.float32) * 0.01
    b3 = jax.random.normal(kb3, (1, OUT), jnp.float32) * 0.01
    return {"w1": w1, "b1": b1, "w2": w2, "b2": b2, "w3": w3, "b3": b3}


def reference_forward(x, p, compute_dtype=jnp.bfloat16):
    """Pure-JAX reference mirroring the kernel's bf16-input / f32-accumulate policy."""
    cd = compute_dtype
    h1 = jnp.dot(x.astype(cd), p["w1"].astype(cd),
                 preferred_element_type=jnp.float32)
    h1 = jnp.maximum(h1 + p["b1"], 0.0)
    h2 = jnp.dot(h1.astype(cd), p["w2"].astype(cd),
                 preferred_element_type=jnp.float32)
    h2 = jnp.maximum(h2 + p["b2"], 0.0)
    out = jnp.dot(h2.astype(cd), p["w3"].astype(cd),
                  preferred_element_type=jnp.float32)
    return out + p["b3"]


if __name__ == "__main__":
    key = jax.random.PRNGKey(0)
    kx, kx2, kp = jax.random.split(key, 3)
    params = init_params(kp)

    # Tiny batch: clamps to a single 128-row tile (padded from 8 rows).
    B = 8
    x = jax.random.normal(kx, (B, IN_DIM), jnp.float32)
    out = jax.block_until_ready(multimodal_forward(x, params))
    ref = reference_forward(x, params)
    assert out.shape == (B, OUT), out.shape
    assert jnp.allclose(out, ref, atol=1e-3, rtol=1e-3), (
        float(jnp.max(jnp.abs(out - ref))))

    # Ragged batch with default tiling: half-cap gives 2 parallel 256-row tiles
    # (exercises padding + multi-tile "parallel" grid).
    B2 = 260
    x2 = jax.random.normal(kx2, (B2, IN_DIM), jnp.float32)
    out2 = jax.block_until_ready(multimodal_forward(x2, params))
    ref2 = reference_forward(x2, params)
    assert out2.shape == (B2, OUT), out2.shape
    assert jnp.allclose(out2, ref2, atol=1e-3, rtol=1e-3), (
        float(jnp.max(jnp.abs(out2 - ref2))))

    # Caller-provided bf16 activations: in-kernel cast is a no-op, same result.
    out3 = jax.block_until_ready(
        multimodal_forward(x2.astype(jnp.bfloat16), params))
    assert jnp.allclose(out3, ref2, atol=1e-3, rtol=1e-3), (
        float(jnp.max(jnp.abs(out3 - ref2))))

    # Explicitly small tile: 3-step grid (tb_eff=128) over the same ragged batch.
    out4 = jax.block_until_ready(multimodal_forward(x2, params, tb=128))
    assert jnp.allclose(out4, ref2, atol=1e-3, rtol=1e-3), (
        float(jnp.max(jnp.abs(out4 - ref2))))

    print("KERNEL_OK")
</pallas_src>

<mosaic_0001>
module attributes {stable_mosaic.version = 11 : i64} {
  func.func @mlp_kernel(%arg0: i32, %arg1: memref<128x768xf32, #tpu.memory_space<vmem>>, %arg2: memref<768x512xbf16, #tpu.memory_space<vmem>>, %arg3: memref<1x512xf32, #tpu.memory_space<vmem>>, %arg4: memref<512x32xbf16, #tpu.memory_space<vmem>>, %arg5: memref<1x32xf32, #tpu.memory_space<vmem>>, %arg6: memref<8x32xbf16, #tpu.memory_space<vmem>>, %arg7: memref<1x1xf32, #tpu.memory_space<vmem>>, %arg8: memref<1x128xf32, #tpu.memory_space<vmem>>) attributes {dimension_semantics = [#tpu.dimension_semantics<parallel>], iteration_bounds = array<i64: 1>, scalar_prefetch = 0 : i64, scratch_operands = 0 : i64, tpu.core_type = #tpu.core_type<tc>, window_params = [{transform_indices = @transform_0, window_bounds = array<i64: 128, 768>}, {pipeline_mode = #tpu.pipeline_mode<synchronous>, transform_indices = @transform_1, window_bounds = array<i64: 768, 512>}, {pipeline_mode = #tpu.pipeline_mode<synchronous>, transform_indices = @transform_2, window_bounds = array<i64: 1, 512>}, {pipeline_mode = #tpu.pipeline_mode<synchronous>, transform_indices = @transform_3, window_bounds = array<i64: 512, 32>}, {pipeline_mode = #tpu.pipeline_mode<synchronous>, transform_indices = @transform_4, window_bounds = array<i64: 1, 32>}, {pipeline_mode = #tpu.pipeline_mode<synchronous>, transform_indices = @transform_5, window_bounds = array<i64: 8, 32>}, {pipeline_mode = #tpu.pipeline_mode<synchronous>, transform_indices = @transform_6, window_bounds = array<i64: 1, 1>}, {transform_indices = @transform_7, window_bounds = array<i64: 1, 128>}]} {
    %c0 = arith.constant 0 : index
    %c0_0 = arith.constant 0 : index
    %0 = vector.load %arg1[%c0, %c0_0] : memref<128x768xf32, #tpu.memory_space<vmem>>, vector<128x768xf32>
    %1 = arith.truncf %0 : vector<128x768xf32> to vector<128x768xbf16>
    %c0_1 = arith.constant 0 : index
    %c0_2 = arith.constant 0 : index
    %2 = vector.load %arg2[%c0_1, %c0_2] : memref<768x512xbf16, #tpu.memory_space<vmem>>, vector<768x512xbf16>
    %cst = arith.constant dense<0.000000e+00> : vector<128x512xf32>
    %3 = tpu.matmul %1, %2, %cst {dimension_numbers = #tpu.dot_dimension_numbers<[1], [0], [0], [1], [0, 0, 1, 1], [], []>} : vector<128x768xbf16>, vector<768x512xbf16>, vector<128x512xf32> -> vector<128x512xf32>
    %c0_3 = arith.constant 0 : index
    %c0_4 = arith.constant 0 : index
    %4 = vector.load %arg3[%c0_3, %c0_4] : memref<1x512xf32, #tpu.memory_space<vmem>>, vector<1x512xf32>
    %5 = vector.broadcast %4 : vector<1x512xf32> to vector<128x512xf32>
    %6 = arith.addf %3, %5 : vector<128x512xf32>
    %cst_5 = arith.constant 0.000000e+00 : f32
    %7 = vector.broadcast %cst_5 : f32 to vector<128x512xf32>
    %8 = arith.maximumf %6, %7 : vector<128x512xf32>
    %9 = arith.truncf %8 : vector<128x512xf32> to vector<128x512xbf16>
    %c0_6 = arith.constant 0 : index
    %c0_7 = arith.constant 0 : index
    %10 = vector.load %arg4[%c0_6, %c0_7] : memref<512x32xbf16, #tpu.memory_space<vmem>>, vector<512x32xbf16>
    %cst_8 = arith.constant dense<0.000000e+00> : vector<128x32xf32>
    %11 = tpu.matmul %9, %10, %cst_8 {dimension_numbers = #tpu.dot_dimension_numbers<[1], [0], [0], [1], [0, 0, 1, 1], [], []>} : vector<128x512xbf16>, vector<512x32xbf16>, vector<128x32xf32> -> vector<128x32xf32>
    %c0_9 = arith.constant 0 : index
    %c0_10 = arith.constant 0 : index
    %12 = vector.load %arg5[%c0_9, %c0_10] : memref<1x32xf32, #tpu.memory_space<vmem>>, vector<1x32xf32>
    %13 = vector.broadcast %12 : vector<1x32xf32> to vector<128x32xf32>
    %14 = arith.addf %11, %13 : vector<128x32xf32>
    %cst_11 = arith.constant 0.000000e+00 : f32
    %15 = vector.broadcast %cst_11 : f32 to vector<128x32xf32>
    %16 = arith.maximumf %14, %15 : vector<128x32xf32>
    %c0_12 = arith.constant 0 : index
    %c0_13 = arith.constant 0 : index
    %17 = vector.load %arg6[%c0_12, %c0_13] : memref<8x32xbf16, #tpu.memory_space<vmem>>, vector<8x32xbf16>
    %18 = arith.truncf %16 : vector<128x32xf32> to vector<128x32xbf16>
    %cst_14 = arith.constant dense<0.000000e+00> : vector<8x128xf32>
    %19 = tpu.matmul %17, %18, %cst_14 {dimension_numbers = #tpu.dot_dimension_numbers<[1], [1], [0], [0], [0, 0, 1, 0], [], []>} : vector<8x32xbf16>, vector<128x32xbf16>, vector<8x128xf32> -> vector<8x128xf32>
    %20 = vector.extract_strided_slice %19 {offsets = [0, 0], sizes = [1, 128], strides = [1, 1]} : vector<8x128xf32> to vector<1x128xf32>
    %c0_15 = arith.constant 0 : index
    %c0_16 = arith.constant 0 : index
    %21 = vector.load %arg7[%c0_15, %c0_16] : memref<1x1xf32, #tpu.memory_space<vmem>>, vector<1x1xf32>
    %22 = vector.broadcast %21 : vector<1x1xf32> to vector<1x128xf32>
    %23 = arith.addf %20, %22 : vector<1x128xf32>
    %c0_17 = arith.constant 0 : index
    %c0_18 = arith.constant 0 : index
    %24 = vector.load %arg8[%c0_17, %c0_18] : memref<1x128xf32, #tpu.memory_space<vmem>>, vector<1x128xf32>
    tpu.vector_store %arg8[%c0_17, %c0_18], %23 {strides = array<i32>} : memref<1x128xf32, #tpu.memory_space<vmem>>, vector<1x128xf32>,
    return
  }
  func.func @transform_0(%arg0: i32) -> (i32, i32) {
    %c0_i32 = arith.constant 0 : i32
    %c0_i32_0 = arith.constant 0 : i32
    return %arg0, %c0_i32 : i32, i32
  }
  func.func @transform_1(%arg0: i32) -> (i32, i32) {
    %c0_i32 = arith.constant 0 : i32
    %c0_i32_0 = arith.constant 0 : i32
    %c0_i32_1 = arith.constant 0 : i32
    return %c0_i32, %c0_i32_0 : i32, i32
  }
  func.func @transform_2(%arg0: i32) -> (i32, i32) {
    %c0_i32 = arith.constant 0 : i32
    %c0_i32_0 = arith.constant 0 : i32
    %c0_i32_1 = arith.constant 0 : i32
    return %c0_i32, %c0_i32_0 : i32, i32
  }
  func.func @transform_3(%arg0: i32) -> (i32, i32) {
    %c0_i32 = arith.constant 0 : i32
    %c0_i32_0 = arith.constant 0 : i32
    %c0_i32_1 = arith.constant 0 : i32
    return %c0_i32, %c0_i32_0 : i32, i32
  }
  func.func @transform_4(%arg0: i32) -> (i32, i32) {
    %c0_i32 = arith.constant 0 : i32
    %c0_i32_0 = arith.constant 0 : i32
    %c0_i32_1 = arith.constant 0 : i32
    return %c0_i32, %c0_i32_0 : i32, i32
  }
  func.func @transform_5(%arg0: i32) -> (i32, i32) {
    %c0_i32 = arith.constant 0 : i32
    %c0_i32_0 = arith.constant 0 : i32
    %c0_i32_1 = arith.constant 0 : i32
    return %c0_i32, %c0_i32_0 : i32, i32
  }
  func.func @transform_6(%arg0: i32) -> (i32, i32) {
    %c0_i32 = arith.constant 0 : i32
    %c0_i32_0 = arith.constant 0 : i32
    %c0_i32_1 = arith.constant 0 : i32
    return %c0_i32, %c0_i32_0 : i32, i32
  }
  func.func @transform_7(%arg0: i32) -> (i32, i32) {
    %c0_i32 = arith.constant 0 : i32
    %c0_i32_0 = arith.constant 0 : i32
    return %c0_i32, %arg0 : i32, i32
  }
}

</mosaic_0001>

<llo_original>
// kernel: tpu_custom_call.1
$region0: #{tpu_custom_call.1}
  #allocation0 [shape = 'u32[]', space=smem, size = 0x4, offset = 0x4, fixed_abs, tag = 'smem constant byte address 0x4 - core index']
  #allocation1 [shape = 'u32[144,128]{1,0:T(1,128)}', space=vmem, size = 0x12000, scoped, tag = 'internal scratch']
  #allocation2 [shape = 'f32[1,1]{1,0:T(1,128)S(1)}', space=vmem, size = 0x200, scoped, tag = 'scoped memory for tpu_custom_call.1']
  %s0 = inlined_call_operand.hbm [shape: f32[128,768], index: 0, kind: input, shape index: {}]
  %s1 = inlined_call_operand.hbm [shape: bf16[768,512], index: 1, kind: input, shape index: {}]
  %s2 = inlined_call_operand.vmem [shape: f32[1,512], index: 2, kind: input, shape index: {}]
  %s3 = inlined_call_operand.vmem [shape: bf16[512,32], index: 3, kind: input, shape index: {}]
  %s4 = inlined_call_operand.vmem [shape: f32[1,32], index: 4, kind: input, shape index: {}]
  %s5 = inlined_call_operand.vmem [shape: bf16[8,32], index: 5, kind: input, shape index: {}]
  %s6 = inlined_call_operand.<no memory space> [shape: f32[1,1], index: 6, kind: input, shape index: {}]
  %s7 = inlined_call_operand.hbm [shape: f32[1,128], index: 7, kind: output, shape index: {}]
  %s8 = sld [smem:[#allocation0]]
  $region46: #{tpu_custom_call.1} parent=0
    _
  %s10 = ssub.s32 1, %s8
  %s11 = scalar_select 0, %s10, %s8
  %v12 = vstv %s6
  %13 = vst [vmem:[#allocation2] sm:$0x1] %v12
  $region1: #{tpu_custom_call.1} parent=0
    #allocation3 [shape = 'u8[393216]{0}', space=vmem, size = 0x60000, scoped, tag = 'input window, operand 0, single buffered']
    #allocation4 [shape = 's32[1]{0}', space=sflag, size = 0x4, scoped, tag = 'scoped memory for tpu_custom_call.1']
    #allocation5 [shape = 's32[1]{0}', space=sflag, size = 0x4, scoped, tag = 'scoped memory for tpu_custom_call.1']
    #allocation6 [shape = 'u8[786432]{0}', space=vmem, size = 0xc0000, scoped, tag = 'input window, operand 1, single buffered']
    #allocation7 [shape = 's32[1]{0}', space=sflag, size = 0x4, scoped, tag = 'scoped memory for tpu_custom_call.1']
    #allocation8 [shape = 'u8[512]{0}', space=vmem, size = 0x400, scoped, tag = 'output window, operand 0, single buffered']
    %14 = vsyncpa [#allocation4], 0
    %15 = vsyncpa [#allocation7], 0
    %16 = vsyncpa [#allocation5], 0
    // Predicated region
    $region2: #{tpu_custom_call.1} parent=1 // pred_check
      _
    $region3: #{tpu_custom_call.1} parent=1 // pred_check_branch
      %18 = sbr.rel (0) target = $region5
    $region4: #{tpu_custom_call.1} parent=1 // pred_region
      %s20 = ssub.s32 12288, 12288
      %21 = vsyncadd [#allocation4], %s20
      %s22 = sshll.u32 [#allocation3], 4
      %s23 = int_to_ptr.vmem [resolvable:$true] %s22
      %28 = dma.hbm_to_vmem [thread:$0]  %s0, 12288, %s23, [#allocation4], 768, 768, 48
    $region5: #{tpu_custom_call.1} parent=1 // pred_fallthru
      _
    // Predicated region
    $region6: #{tpu_custom_call.1} parent=1 // pred_check
      _
    $region7: #{tpu_custom_call.1} parent=1 // pred_check_branch
      %30 = sbr.rel (0) target = $region9
    $region8: #{tpu_custom_call.1} parent=1 // pred_region
      %s32 = ssub.s32 24576, 24576
      %33 = vsyncadd [#allocation7], %s32
      %s34 = sshll.u32 [#allocation6], 4
      %s35 = int_to_ptr.vmem [resolvable:$true] %s34
      %40 = dma.hbm_to_vmem [thread:$0]  %s1, 24576, %s35, [#allocation7], 256, 256, 16
    $region9: #{tpu_custom_call.1} parent=1 // pred_fallthru
      _
    // Predicated region
    $region10: #{tpu_custom_call.1} parent=1 // pred_check
      _
    $region11: #{tpu_custom_call.1} parent=1 // pred_check_branch
      %42 = sbr.rel (0) target = $region13
    $region12: #{tpu_custom_call.1} parent=1 // pred_region
      _
    $region13: #{tpu_custom_call.1} parent=1 // pred_fallthru
      _
    // Predicated region
    $region14: #{tpu_custom_call.1} parent=1 // pred_check
      _
    $region15: #{tpu_custom_call.1} parent=1 // pred_check_branch
      %44 = sbr.rel (0) target = $region17
    $region16: #{tpu_custom_call.1} parent=1 // pred_region
      _
    $region17: #{tpu_custom_call.1} parent=1 // pred_fallthru
      _
    // Predicated region
    $region18: #{tpu_custom_call.1} parent=1 // pred_check
      _
    $region19: #{tpu_custom_call.1} parent=1 // pred_check_branch
      %46 = sbr.rel (0) target = $region21
    $region20: #{tpu_custom_call.1} parent=1 // pred_region
      _
    $region21: #{tpu_custom_call.1} parent=1 // pred_fallthru
      _
    // Predicated region
    $region22: #{tpu_custom_call.1} parent=1 // pred_check
      _
    $region23: #{tpu_custom_call.1} parent=1 // pred_check_branch
      %48 = sbr.rel (0) target = $region25
    $region24: #{tpu_custom_call.1} parent=1 // pred_region
      _
    $region25: #{tpu_custom_call.1} parent=1 // pred_fallthru
      _
    // Predicated region
    $region26: #{tpu_custom_call.1} parent=1 // pred_check
      _
    $region27: #{tpu_custom_call.1} parent=1 // pred_check_branch
      %50 = sbr.rel (0) target = $region29
    $region28: #{tpu_custom_call.1} parent=1 // pred_region
      _
    $region29: #{tpu_custom_call.1} parent=1 // pred_fallthru
      _
    // Predicated region
    $region30: #{tpu_custom_call.1} parent=1 // pred_check
      _
    $region31: #{tpu_custom_call.1} parent=1 // pred_check_branch
      %52 = sbr.rel (0) target = $region33
    $region32: #{tpu_custom_call.1} parent=1 // pred_region
      %53 = dma.done [#allocation4], 12288
    $region33: #{tpu_custom_call.1} parent=1 // pred_fallthru
      _
    // Predicated region
    $region34: #{tpu_custom_call.1} parent=1 // pred_check
      _
    $region35: #{tpu_custom_call.1} parent=1 // pred_check_branch
      %55 = sbr.rel (0) target = $region37
    $region36: #{tpu_custom_call.1} parent=1 // pred_region
      %56 = dma.done [#allocation7], 24576
    $region37: #{tpu_custom_call.1} parent=1 // pred_fallthru
      _
    %v58 = vld [vmem:[#allocation3] sm:$0xff]
    %v59 = vld [vmem:[#allocation3 + $0x8] sm:$0xff]
    %v60 = vld [vmem:[#allocation3 + $0x10] sm:$0xff]
    %v61 = vld [vmem:[#allocation3 + $0x18] sm:$0xff]
    %v62 = vld [vmem:[#allocation3 + $0x20] sm:$0xff]
    %v63 = vld [vmem:[#allocation3 + $0x28] sm:$0xff]
    %v64 = vld [vmem:[#allocation3 + $0x30] sm:$0xff]
    %v65 = vld [vmem:[#allocation3 + $0x38] sm:$0xff]
    %v66 = vld [vmem:[#allocation3 + $0x40] sm:$0xff]
    %v67 = vld [vmem:[#allocation3 + $0x48] sm:$0xff]
    %v68 = vld [vmem:[#allocation3 + $0x50] sm:$0xff]
    %v69 = vld [vmem:[#allocation3 + $0x58] sm:$0xff]
    %v70 = vld [vmem:[#allocation3 + $0x60] sm:$0xff]
    %v71 = vld [vmem:[#allocation3 + $0x68] sm:$0xff]
    %v72 = vld [vmem:[#allocation3 + $0x70] sm:$0xff]
    %v73 = vld [vmem:[#allocation3 + $0x78] sm:$0xff]
    %v74 = vld [vmem:[#allocation3 + $0x80] sm:$0xff]
    %v75 = vld [vmem:[#allocation3 + $0x88] sm:$0xff]
    %v76 = vld [vmem:[#allocation3 + $0x90] sm:$0xff]
    %v77 = vld [vmem:[#allocation3 + $0x98] sm:$0xff]
    %v78 = vld [vmem:[#allocation3 + $0xa0] sm:$0xff]
    %v79 = vld [vmem:[#allocation3 + $0xa8] sm:$0xff]
    %v80 = vld [vmem:[#allocation3 + $0xb0] sm:$0xff]
    %v81 = vld [vmem:[#allocation3 + $0xb8] sm:$0xff]
    %v82 = vld [vmem:[#allocation3 + $0xc0] sm:$0xff]
    %v83 = vld [vmem:[#allocation3 + $0xc8] sm:$0xff]
    %v84 = vld [vmem:[#allocation3 + $0xd0] sm:$0xff]
    %v85 = vld [vmem:[#allocation3 + $0xd8] sm:$0xff]
    %v86 = vld [vmem:[#allocation3 + $0xe0] sm:$0xff]
    %v87 = vld [vmem:[#allocation3 + $0xe8] sm:$0xff]
    %v88 = vld [vmem:[#allocation3 + $0xf0] sm:$0xff]
    %v89 = vld [vmem:[#allocation3 + $0xf8] sm:$0xff]
    %v90 = vld [vmem:[#allocation3 + $0x100] sm:$0xff]
    %v91 = vld [vmem:[#allocation3 + $0x108] sm:$0xff]
    %v92 = vld [vmem:[#allocation3 + $0x110] sm:$0xff]
    %v93 = vld [vmem:[#allocation3 + $0x118] sm:$0xff]
    %v94 = vld [vmem:[#allocation3 + $0x120] sm:$0xff]
    %v95 = vld [vmem:[#allocation3 + $0x128] sm:$0xff]
    %v96 = vld [vmem:[#allocation3 + $0x130] sm:$0xff]
    %v97 = vld [vmem:[#allocation3 + $0x138] sm:$0xff]
    %v98 = vld [vmem:[#allocation3 + $0x140] sm:$0xff]
    %v99 = vld [vmem:[#allocation3 + $0x148] sm:$0xff]
    %v100 = vld [vmem:[#allocation3 + $0x150] sm:$0xff]
    %v101 = vld [vmem:[#allocation3 + $0x158] sm:$0xff]
    %v102 = vld [vmem:[#allocation3 + $0x160] sm:$0xff]
    %v103 = vld [vmem:[#allocation3 + $0x168] sm:$0xff]
    %v104 = vld [vmem:[#allocation3 + $0x170] sm:$0xff]
    %v105 = vld [vmem:[#allocation3 + $0x178] sm:$0xff]
    %v106 = vld [vmem:[#allocation3 + $0x180] sm:$0xff]
    %v107 = vld [vmem:[#allocation3 + $0x188] sm:$0xff]
    %v108 = vld [vmem:[#allocation3 + $0x190] sm:$0xff]
    %v109 = vld [vmem:[#allocation3 + $0x198] sm:$0xff]
    %v110 = vld [vmem:[#allocation3 + $0x1a0] sm:$0xff]
    %v111 = vld [vmem:[#allocation3 + $0x1a8] sm:$0xff]
    %v112 = vld [vmem:[#allocation3 + $0x1b0] sm:$0xff]
    %v113 = vld [vmem:[#allocation3 + $0x1b8] sm:$0xff]
    %v114 = vld [vmem:[#allocation3 + $0x1c0] sm:$0xff]
    %v115 = vld [vmem:[#allocation3 + $0x1c8] sm:$0xff]
    %v116 = vld [vmem:[#allocation3 + $0x1d0] sm:$0xff]
    %v117 = vld [vmem:[#allocation3 + $0x1d8] sm:$0xff]
    %v118 = vld [vmem:[#allocation3 + $0x1e0] sm:$0xff]
    %v119 = vld [vmem:[#allocation3 + $0x1e8] sm:$0xff]
    %v120 = vld [vmem:[#allocation3 + $0x1f0] sm:$0xff]
    %v121 = vld [vmem:[#allocation3 + $0x1f8] sm:$0xff]
    %v122 = vld [vmem:[#allocation3 + $0x200] sm:$0xff]
    %v123 = vld [vmem:[#allocation3 + $0x208] sm:$0xff]
    %v124 = vld [vmem:[#allocation3 + $0x210] sm:$0xff]
    %v125 = vld [vmem:[#allocation3 + $0x218] sm:$0xff]
    %v126 = vld [vmem:[#allocation3 + $0x220] sm:$0xff]
    %v127 = vld [vmem:[#allocation3 + $0x228] sm:$0xff]
    %v128 = vld [vmem:[#allocation3 + $0x230] sm:$0xff]
    %v129 = vld [vmem:[#allocation3 + $0x238] sm:$0xff]
    %v130 = vld [vmem:[#allocation3 + $0x240] sm:$0xff]
    %v131 = vld [vmem:[#allocation3 + $0x248] sm:$0xff]
    %v132 = vld [vmem:[#allocation3 + $0x250] sm:$0xff]
    %v133 = vld [vmem:[#allocation3 + $0x258] sm:$0xff]
    %v134 = vld [vmem:[#allocation3 + $0x260] sm:$0xff]
    %v135 = vld [vmem:[#allocation3 + $0x268] sm:$0xff]
    %v136 = vld [vmem:[#allocation3 + $0x270] sm:$0xff]
    %v137 = vld [vmem:[#allocation3 + $0x278] sm:$0xff]
    %v138 = vld [vmem:[#allocation3 + $0x280] sm:$0xff]
    %v139 = vld [vmem:[#allocation3 + $0x288] sm:$0xff]
    %v140 = vld [vmem:[#allocation3 + $0x290] sm:$0xff]
    %v141 = vld [vmem:[#allocation3 + $0x298] sm:$0xff]
    %v142 = vld [vmem:[#allocation3 + $0x2a0] sm:$0xff]
    %v143 = vld [vmem:[#allocation3 + $0x2a8] sm:$0xff]
    %v144 = vld [vmem:[#allocation3 + $0x2b0] sm:$0xff]
    %v145 = vld [vmem:[#allocation3 + $0x2b8] sm:$0xff]
    %v146 = vld [vmem:[#allocation3 + $0x2c0] sm:$0xff]
    %v147 = vld [vmem:[#allocation3 + $0x2c8] sm:$0xff]
    %v148 = vld [vmem:[#allocation3 + $0x2d0] sm:$0xff]
    %v149 = vld [vmem:[#allocation3 + $0x2d8] sm:$0xff]
    %v150 = vld [vmem:[#allocation3 + $0x2e0] sm:$0xff]
    %v151 = vld [vmem:[#allocation3 + $0x2e8] sm:$0xff]
    %v152 = vld [vmem:[#allocation3 + $0x2f0] sm:$0xff]
    %v153 = vld [vmem:[#allocation3 + $0x2f8] sm:$0xff]
    %v154 = vpack.c.bf16 %v64, %v58
    %v155 = vpack.c.bf16 %v65, %v59
    %v156 = vpack.c.bf16 %v66, %v60
    %v157 = vpack.c.bf16 %v67, %v61
    %v158 = vpack.c.bf16 %v68, %v62
    %v159 = vpack.c.bf16 %v69, %v63
    %v160 = vpack.c.bf16 %v76, %v70
    %v161 = vpack.c.bf16 %v77, %v71
    %v162 = vpack.c.bf16 %v78, %v72
    %v163 = vpack.c.bf16 %v79, %v73
    %v164 = vpack.c.bf16 %v80, %v74
    %v165 = vpack.c.bf16 %v81, %v75
    %v166 = vpack.c.bf16 %v88, %v82
    %v167 = vpack.c.bf16 %v89, %v83
    %v168 = vpack.c.bf16 %v90, %v84
    %v169 = vpack.c.bf16 %v91, %v85
    %v170 = vpack.c.bf16 %v92, %v86
    %v171 = vpack.c.bf16 %v93, %v87
    %v172 = vpack.c.bf16 %v100, %v94
    %v173 = vpack.c.bf16 %v101, %v95
    %v174 = vpack.c.bf16 %v102, %v96
    %v175 = vpack.c.bf16 %v103, %v97
    %v176 = vpack.c.bf16 %v104, %v98
    %v177 = vpack.c.bf16 %v105, %v99
    %v178 = vpack.c.bf16 %v112, %v106
    %v179 = vpack.c.bf16 %v113, %v107
    %v180 = vpack.c.bf16 %v114, %v108
    %v181 = vpack.c.bf16 %v115, %v109
    %v182 = vpack.c.bf16 %v116, %v110
    %v183 = vpack.c.bf16 %v117, %v111
    %v184 = vpack.c.bf16 %v124, %v118
    %v185 = vpack.c.bf16 %v125, %v119
    %v186 = vpack.c.bf16 %v126, %v120
    %v187 = vpack.c.bf16 %v127, %v121
    %v188 = vpack.c.bf16 %v128, %v122
    %v189 = vpack.c.bf16 %v129, %v123
    %v190 = vpack.c.bf16 %v136, %v130
    %v191 = vpack.c.bf16 %v137, %v131
    %v192 = vpack.c.bf16 %v138, %v132
    %v193 = vpack.c.bf16 %v139, %v133
    %v194 = vpack.c.bf16 %v140, %v134
    %v195 = vpack.c.bf16 %v141, %v135
    %v196 = vpack.c.bf16 %v148, %v142
    %v197 = vpack.c.bf16 %v149, %v143
    %v198 = vpack.c.bf16 %v150, %v144
    %v199 = vpack.c.bf16 %v151, %v145
    %v200 = vpack.c.bf16 %v152, %v146
    %v201 = vpack.c.bf16 %v153, %v147
    %v202 = vld [vmem:[#allocation6] sm:$0xff]
    %v203 = vld [vmem:[#allocation6 + $0x8] sm:$0xff]
    %v204 = vld [vmem:[#allocation6 + $0x10] sm:$0xff]
    %v205 = vld [vmem:[#allocation6 + $0x18] sm:$0xff]
    %v206 = vld [vmem:[#allocation6 + $0x20] sm:$0xff]
    %v207 = vld [vmem:[#allocation6 + $0x28] sm:$0xff]
    %v208 = vld [vmem:[#allocation6 + $0x30] sm:$0xff]
    %v209 = vld [vmem:[#allocation6 + $0x38] sm:$0xff]
    %v210 = vld [vmem:[#allocation6 + $0x40] sm:$0xff]
    %v211 = vld [vmem:[#allocation6 + $0x48] sm:$0xff]
    %v212 = vld [vmem:[#allocation6 + $0x50] sm:$0xff]
    %v213 = vld [vmem:[#allocation6 + $0x58] sm:$0xff]
    %v214 = vld [vmem:[#allocation6 + $0x60] sm:$0xff]
    %v215 = vld [vmem:[#allocation6 + $0x68] sm:$0xff]
    %v216 = vld [vmem:[#allocation6 + $0x70] sm:$0xff]
    %v217 = vld [vmem:[#allocation6 + $0x78] sm:$0xff]
    %v218 = vld [vmem:[#allocation6 + $0x80] sm:$0xff]
    %v219 = vld [vmem:[#allocation6 + $0x88] sm:$0xff]
    %v220 = vld [vmem:[#allocation6 + $0x90] sm:$0xff]
    %v221 = vld [vmem:[#allocation6 + $0x98] sm:$0xff]
    %v222 = vld [vmem:[#allocation6 + $0xa0] sm:$0xff]
    %v223 = vld [vmem:[#allocation6 + $0xa8] sm:$0xff]
    %v224 = vld [vmem:[#allocation6 + $0xb0] sm:$0xff]
    %v225 = vld [vmem:[#allocation6 + $0xb8] sm:$0xff]
    %v226 = vld [vmem:[#allocation6 + $0xc0] sm:$0xff]
    %v227 = vld [vmem:[#allocation6 + $0xc8] sm:$0xff]
    %v228 = vld [vmem:[#allocation6 + $0xd0] sm:$0xff]
    %v229 = vld [vmem:[#allocation6 + $0xd8] sm:$0xff]
    %v230 = vld [vmem:[#allocation6 + $0xe0] sm:$0xff]
    %v231 = vld [vmem:[#allocation6 + $0xe8] sm:$0xff]
    %v232 = vld [vmem:[#allocation6 + $0xf0] sm:$0xff]
    %v233 = vld [vmem:[#allocation6 + $0xf8] sm:$0xff]
    %v234 = vld [vmem:[#allocation6 + $0x100] sm:$0xff]
    %v235 = vld [vmem:[#allocation6 + $0x108] sm:$0xff]
    %v236 = vld [vmem:[#allocation6 + $0x110] sm:$0xff]
    %v237 = vld [vmem:[#allocation6 + $0x118] sm:$0xff]
    %v238 = vld [vmem:[#allocation6 + $0x120] sm:$0xff]
    %v239 = vld [vmem:[#allocation6 + $0x128] sm:$0xff]
    %v240 = vld [vmem:[#allocation6 + $0x130] sm:$0xff]
    %v241 = vld [vmem:[#allocation6 + $0x138] sm:$0xff]
    %v242 = vld [vmem:[#allocation6 + $0x140] sm:$0xff]
    %v243 = vld [vmem:[#allocation6 + $0x148] sm:$0xff]
    %v244 = vld [vmem:[#allocation6 + $0x150] sm:$0xff]
    %v245 = vld [vmem:[#allocation6 + $0x158] sm:$0xff]
    %v246 = vld [vmem:[#allocation6 + $0x160] sm:$0xff]
    %v247 = vld [vmem:[#allocation6 + $0x168] sm:$0xff]
    %v248 = vld [vmem:[#allocation6 + $0x170] sm:$0xff]
    %v249 = vld [vmem:[#allocation6 + $0x178] sm:$0xff]
    %v250 = vld [vmem:[#allocation6 + $0x180] sm:$0xff]
    %v251 = vld [vmem:[#allocation6 + $0x188] sm:$0xff]
    %v252 = vld [vmem:[#allocation6 + $0x190] sm:$0xff]
    %v253 = vld [vmem:[#allocation6 + $0x198] sm:$0xff]
    %v254 = vld [vmem:[#allocation6 + $0x1a0] sm:$0xff]
    %v255 = vld [vmem:[#allocation6 + $0x1a8] sm:$0xff]
    %v256 = vld [vmem:[#allocation6 + $0x1b0] sm:$0xff]
    %v257 = vld [vmem:[#allocation6 + $0x1b8] sm:$0xff]
    %v258 = vld [vmem:[#allocation6 + $0x1c0] sm:$0xff]
    %v259 = vld [vmem:[#allocation6 + $0x1c8] sm:$0xff]
    %v260 = vld [vmem:[#allocation6 + $0x1d0] sm:$0xff]
    %v261 = vld [vmem:[#allocation6 + $0x1d8] sm:$0xff]
    %v262 = vld [vmem:[#allocation6 + $0x1e0] sm:$0xff]
    %v263 = vld [vmem:[#allocation6 + $0x1e8] sm:$0xff]
    %v264 = vld [vmem:[#allocation6 + $0x1f0] sm:$0xff]
    %v265 = vld [vmem:[#allocation6 + $0x1f8] sm:$0xff]
    %v266 = vld [vmem:[#allocation6 + $0x200] sm:$0xff]
    %v267 = vld [vmem:[#allocation6 + $0x208] sm:$0xff]
    %v268 = vld [vmem:[#allocation6 + $0x210] sm:$0xff]
    %v269 = vld [vmem:[#allocation6 + $0x218] sm:$0xff]
    %v270 = vld [vmem:[#allocation6 + $0x220] sm:$0xff]
    %v271 = vld [vmem:[#allocation6 + $0x228] sm:$0xff]
    %v272 = vld [vmem:[#allocation6 + $0x230] sm:$0xff]
    %v273 = vld [vmem:[#allocation6 + $0x238] sm:$0xff]
    %v274 = vld [vmem:[#allocation6 + $0x240] sm:$0xff]
    %v275 = vld [vmem:[#allocation6 + $0x248] sm:$0xff]
    %v276 = vld [vmem:[#allocation6 + $0x250] sm:$0xff]
    %v277 = vld [vmem:[#allocation6 + $0x258] sm:$0xff]
    %v278 = vld [vmem:[#allocation6 + $0x260] sm:$0xff]
    %v279 = vld [vmem:[#allocation6 + $0x268] sm:$0xff]
    %v280 = vld [vmem:[#allocation6 + $0x270] sm:$0xff]
    %v281 = vld [vmem:[#allocation6 + $0x278] sm:$0xff]
    %v282 = vld [vmem:[#allocation6 + $0x280] sm:$0xff]
    %v283 = vld [vmem:[#allocation6 + $0x288] sm:$0xff]
    %v284 = vld [vmem:[#allocation6 + $0x290] sm:$0xff]
    %v285 = vld [vmem:[#allocation6 + $0x298] sm:$0xff]
    %v286 = vld [vmem:[#allocation6 + $0x2a0] sm:$0xff]
    %v287 = vld [vmem:[#allocation6 + $0x2a8] sm:$0xff]
    %v288 = vld [vmem:[#allocation6 + $0x2b0] sm:$0xff]
    %v289 = vld [vmem:[#allocation6 + $0x2b8] sm:$0xff]
    %v290 = vld [vmem:[#allocation6 + $0x2c0] sm:$0xff]
    %v291 = vld [vmem:[#allocation6 + $0x2c8] sm:$0xff]
    %v292 = vld [vmem:[#allocation6 + $0x2d0] sm:$0xff]
    %v293 = vld [vmem:[#allocation6 + $0x2d8] sm:$0xff]
    %v294 = vld [vmem:[#allocation6 + $0x2e0] sm:$0xff]
    %v295 = vld [vmem:[#allocation6 + $0x2e8] sm:$0xff]
    %v296 = vld [vmem:[#allocation6 + $0x2f0] sm:$0xff]
    %v297 = vld [vmem:[#allocation6 + $0x2f8] sm:$0xff]
    %v298 = vld [vmem:[#allocation6 + $0x300] sm:$0xff]
    %v299 = vld [vmem:[#allocation6 + $0x308] sm:$0xff]
    %v300 = vld [vmem:[#allocation6 + $0x310] sm:$0xff]
    %v301 = vld [vmem:[#allocation6 + $0x318] sm:$0xff]
    %v302 = vld [vmem:[#allocation6 + $0x320] sm:$0xff]
    %v303 = vld [vmem:[#allocation6 + $0x328] sm:$0xff]
    %v304 = vld [vmem:[#allocation6 + $0x330] sm:$0xff]
    %v305 = vld [vmem:[#allocation6 + $0x338] sm:$0xff]
    %v306 = vld [vmem:[#allocation6 + $0x340] sm:$0xff]
    %v307 = vld [vmem:[#allocation6 + $0x348] sm:$0xff]
    %v308 = vld [vmem:[#allocation6 + $0x350] sm:$0xff]
    %v309 = vld [vmem:[#allocation6 + $0x358] sm:$0xff]
    %v310 = vld [vmem:[#allocation6 + $0x360] sm:$0xff]
    %v311 = vld [vmem:[#allocation6 + $0x368] sm:$0xff]
    %v312 = vld [vmem:[#allocation6 + $0x370] sm:$0xff]
    %v313 = vld [vmem:[#allocation6 + $0x378] sm:$0xff]
    %v314 = vld [vmem:[#allocation6 + $0x380] sm:$0xff]
    %v315 = vld [vmem:[#allocation6 + $0x388] sm:$0xff]
    %v316 = vld [vmem:[#allocation6 + $0x390] sm:$0xff]
    %v317 = vld [vmem:[#allocation6 + $0x398] sm:$0xff]
    %v318 = vld [vmem:[#allocation6 + $0x3a0] sm:$0xff]
    %v319 = vld [vmem:[#allocation6 + $0x3a8] sm:$0xff]
    %v320 = vld [vmem:[#allocation6 + $0x3b0] sm:$0xff]
    %v321 = vld [vmem:[#allocation6 + $0x3b8] sm:$0xff]
    %v322 = vld [vmem:[#allocation6 + $0x3c0] sm:$0xff]
    %v323 = vld [vmem:[#allocation6 + $0x3c8] sm:$0xff]
    %v324 = vld [vmem:[#allocation6 + $0x3d0] sm:$0xff]
    %v325 = vld [vmem:[#allocation6 + $0x3d8] sm:$0xff]
    %v326 = vld [vmem:[#allocation6 + $0x3e0] sm:$0xff]
    %v327 = vld [vmem:[#allocation6 + $0x3e8] sm:$0xff]
    %v328 = vld [vmem:[#allocation6 + $0x3f0] sm:$0xff]
    %v329 = vld [vmem:[#allocation6 + $0x3f8] sm:$0xff]
    %v330 = vld [vmem:[#allocation6 + $0x400] sm:$0xff]
    %v331 = vld [vmem:[#allocation6 + $0x408] sm:$0xff]
    %v332 = vld [vmem:[#allocation6 + $0x410] sm:$0xff]
    %v333 = vld [vmem:[#allocation6 + $0x418] sm:$0xff]
    %v334 = vld [vmem:[#allocation6 + $0x420] sm:$0xff]
    %v335 = vld [vmem:[#allocation6 + $0x428] sm:$0xff]
    %v336 = vld [vmem:[#allocation6 + $0x430] sm:$0xff]
    %v337 = vld [vmem:[#allocation6 + $0x438] sm:$0xff]
    %v338 = vld [vmem:[#allocation6 + $0x440] sm:$0xff]
    %v339 = vld [vmem:[#allocation6 + $0x448] sm:$0xff]
    %v340 = vld [vmem:[#allocation6 + $0x450] sm:$0xff]
    %v341 = vld [vmem:[#allocation6 + $0x458] sm:$0xff]
    %v342 = vld [vmem:[#allocation6 + $0x460] sm:$0xff]
    %v343 = vld [vmem:[#allocation6 + $0x468] sm:$0xff]
    %v344 = vld [vmem:[#allocation6 + $0x470] sm:$0xff]
    %v345 = vld [vmem:[#allocation6 + $0x478] sm:$0xff]
    %v346 = vld [vmem:[#allocation6 + $0x480] sm:$0xff]
    %v347 = vld [vmem:[#allocation6 + $0x488] sm:$0xff]
    %v348 = vld [vmem:[#allocation6 + $0x490] sm:$0xff]
    %v349 = vld [vmem:[#allocation6 + $0x498] sm:$0xff]
    %v350 = vld [vmem:[#allocation6 + $0x4a0] sm:$0xff]
    %v351 = vld [vmem:[#allocation6 + $0x4a8] sm:$0xff]
    %v352 = vld [vmem:[#allocation6 + $0x4b0] sm:$0xff]
    %v353 = vld [vmem:[#allocation6 + $0x4b8] sm:$0xff]
    %v354 = vld [vmem:[#allocation6 + $0x4c0] sm:$0xff]
    %v355 = vld [vmem:[#allocation6 + $0x4c8] sm:$0xff]
    %v356 = vld [vmem:[#allocation6 + $0x4d0] sm:$0xff]
    %v357 = vld [vmem:[#allocation6 + $0x4d8] sm:$0xff]
    %v358 = vld [vmem:[#allocation6 + $0x4e0] sm:$0xff]
    %v359 = vld [vmem:[#allocation6 + $0x4e8] sm:$0xff]
    %v360 = vld [vmem:[#allocation6 + $0x4f0] sm:$0xff]
    %v361 = vld [vmem:[#allocation6 + $0x4f8] sm:$0xff]
    %v362 = vld [vmem:[#allocation6 + $0x500] sm:$0xff]
    %v363 = vld [vmem:[#allocation6 + $0x508] sm:$0xff]
    %v364 = vld [vmem:[#allocation6 + $0x510] sm:$0xff]
    %v365 = vld [vmem:[#allocation6 + $0x518] sm:$0xff]
    %v366 = vld [vmem:[#allocation6 + $0x520] sm:$0xff]
    %v367 = vld [vmem:[#allocation6 + $0x528] sm:$0xff]
    %v368 = vld [vmem:[#allocation6 + $0x530] sm:$0xff]
    %v369 = vld [vmem:[#allocation6 + $0x538] sm:$0xff]
    %v370 = vld [vmem:[#allocation6 + $0x540] sm:$0xff]
    %v371 = vld [vmem:[#allocation6 + $0x548] sm:$0xff]
    %v372 = vld [vmem:[#allocation6 + $0x550] sm:$0xff]
    %v373 = vld [vmem:[#allocation6 + $0x558] sm:$0xff]
    %v374 = vld [vmem:[#allocation6 + $0x560] sm:$0xff]
    %v375 = vld [vmem:[#allocation6 + $0x568] sm:$0xff]
    %v376 = vld [vmem:[#allocation6 + $0x570] sm:$0xff]
    %v377 = vld [vmem:[#allocation6 + $0x578] sm:$0xff]
    %v378 = vld [vmem:[#allocation6 + $0x580] sm:$0xff]
    %v379 = vld [vmem:[#allocation6 + $0x588] sm:$0xff]
    %v380 = vld [vmem:[#allocation6 + $0x590] sm:$0xff]
    %v381 = vld [vmem:[#allocation6 + $0x598] sm:$0xff]
    %v382 = vld [vmem:[#allocation6 + $0x5a0] sm:$0xff]
    %v383 = vld [vmem:[#allocation6 + $0x5a8] sm:$0xff]
    %v384 = vld [vmem:[#allocation6 + $0x5b0] sm:$0xff]
    %v385 = vld [vmem:[#allocation6 + $0x5b8] sm:$0xff]
    %v386 = vld [vmem:[#allocation6 + $0x5c0] sm:$0xff]
    %v387 = vld [vmem:[#allocation6 + $0x5c8] sm:$0xff]
    %v388 = vld [vmem:[#allocation6 + $0x5d0] sm:$0xff]
    %v389 = vld [vmem:[#allocation6 + $0x5d8] sm:$0xff]
    %v390 = vld [vmem:[#allocation6 + $0x5e0] sm:$0xff]
    %v391 = vld [vmem:[#allocation6 + $0x5e8] sm:$0xff]
    %v392 = vld [vmem:[#allocation6 + $0x5f0] sm:$0xff]
    %v393 = vld [vmem:[#allocation6 + $0x5f8] sm:$0xff]
    %v394 = vld [vmem:[%s2] sm:$0xf]
    %v396 = vlaneseq
    %v397 = vshrl.u32 %v396, 7
    %v398 = vsub.s32 0, %v397
    %v399 = vrot.slane %v394, %v398
    %v400 = vlaneseq
    %v401 = vshrl.u32 %v400, 7
    %v402 = vsub.s32 1, %v401
    %v403 = vrot.slane %v394, %v402
    %v404 = vlaneseq
    %v405 = vshrl.u32 %v404, 7
    %v406 = vsub.s32 2, %v405
    %v407 = vrot.slane %v394, %v406
    %v408 = vlaneseq
    %v409 = vshrl.u32 %v408, 7
    %v410 = vsub.s32 3, %v409
    %v411 = vrot.slane %v394, %v410
    %v608 = vunpack.c.l.b16 %v202
    %v609 = vunpack.c.h.b16 %v202
    %v610 = vunpack.c.l.b16 %v203
    %v611 = vunpack.c.h.b16 %v203
    %v612 = vunpack.c.l.b16 %v204
    %v613 = vunpack.c.h.b16 %v204
    %v614 = vunpack.c.l.b16 %v205
    %v615 = vunpack.c.h.b16 %v205
    %v616 = vunpack.c.l.b16 %v206
    %v617 = vunpack.c.h.b16 %v206
    %v618 = vunpack.c.l.b16 %v207
    %v619 = vunpack.c.h.b16 %v207
    %v620 = vunpack.c.l.b16 %v208
    %v621 = vunpack.c.h.b16 %v208
    %v622 = vunpack.c.l.b16 %v209
    %v623 = vunpack.c.h.b16 %v209
    %v624 = vunpack.c.l.b16 %v210
    %v625 = vunpack.c.h.b16 %v210
    %v626 = vunpack.c.l.b16 %v211
    %v627 = vunpack.c.h.b16 %v211
    %v628 = vunpack.c.l.b16 %v212
    %v629 = vunpack.c.h.b16 %v212
    %v630 = vunpack.c.l.b16 %v213
    %v631 = vunpack.c.h.b16 %v213
    %v632 = vunpack.c.l.b16 %v214
    %v633 = vunpack.c.h.b16 %v214
    %v634 = vunpack.c.l.b16 %v215
    %v635 = vunpack.c.h.b16 %v215
    %v636 = vunpack.c.l.b16 %v216
    %v637 = vunpack.c.h.b16 %v216
    %v638 = vunpack.c.l.b16 %v217
    %v639 = vunpack.c.h.b16 %v217
    %v640 = vunpack.c.l.b16 %v218
    %v641 = vunpack.c.h.b16 %v218
    %v642 = vunpack.c.l.b16 %v219
    %v643 = vunpack.c.h.b16 %v219
    %v644 = vunpack.c.l.b16 %v220
    %v645 = vunpack.c.h.b16 %v220
    %v646 = vunpack.c.l.b16 %v221
    %v647 = vunpack.c.h.b16 %v221
    %v648 = vunpack.c.l.b16 %v222
    %v649 = vunpack.c.h.b16 %v222
    %v650 = vunpack.c.l.b16 %v223
    %v651 = vunpack.c.h.b16 %v223
    %v652 = vunpack.c.l.b16 %v224
    %v653 = vunpack.c.h.b16 %v224
    %v654 = vunpack.c.l.b16 %v225
    %v655 = vunpack.c.h.b16 %v225
    %v656 = vunpack.c.l.b16 %v226
    %v657 = vunpack.c.h.b16 %v226
    %v658 = vunpack.c.l.b16 %v227
    %v659 = vunpack.c.h.b16 %v227
    %v660 = vunpack.c.l.b16 %v228
    %v661 = vunpack.c.h.b16 %v228
    %v662 = vunpack.c.l.b16 %v229
    %v663 = vunpack.c.h.b16 %v229
    %v664 = vunpack.c.l.b16 %v230
    %v665 = vunpack.c.h.b16 %v230
    %v666 = vunpack.c.l.b16 %v231
    %v667 = vunpack.c.h.b16 %v231
    %v668 = vunpack.c.l.b16 %v232
    %v669 = vunpack.c.h.b16 %v232
    %v670 = vunpack.c.l.b16 %v233
    %v671 = vunpack.c.h.b16 %v233
    %v672 = vunpack.c.l.b16 %v234
    %v673 = vunpack.c.h.b16 %v234
    %v674 = vunpack.c.l.b16 %v235
    %v675 = vunpack.c.h.b16 %v235
    %v676 = vunpack.c.l.b16 %v236
    %v677 = vunpack.c.h.b16 %v236
    %v678 = vunpack.c.l.b16 %v237
    %v679 = vunpack.c.h.b16 %v237
    %v680 = vunpack.c.l.b16 %v238
    %v681 = vunpack.c.h.b16 %v238
    %v682 = vunpack.c.l.b16 %v239
    %v683 = vunpack.c.h.b16 %v239
    %v684 = vunpack.c.l.b16 %v240
    %v685 = vunpack.c.h.b16 %v240
    %v686 = vunpack.c.l.b16 %v241
    %v687 = vunpack.c.h.b16 %v241
    %v688 = vunpack.c.l.b16 %v242
    %v689 = vunpack.c.h.b16 %v242
    %v690 = vunpack.c.l.b16 %v243
    %v691 = vunpack.c.h.b16 %v243
    %v692 = vunpack.c.l.b16 %v244
    %v693 = vunpack.c.h.b16 %v244
    %v694 = vunpack.c.l.b16 %v245
    %v695 = vunpack.c.h.b16 %v245
    %v696 = vunpack.c.l.b16 %v246
    %v697 = vunpack.c.h.b16 %v246
    %v698 = vunpack.c.l.b16 %v247
    %v699 = vunpack.c.h.b16 %v247
    %v700 = vunpack.c.l.b16 %v248
    %v701 = vunpack.c.h.b16 %v248
    %v702 = vunpack.c.l.b16 %v249
    %v703 = vunpack.c.h.b16 %v249
    %v704 = vunpack.c.l.b16 %v250
    %v705 = vunpack.c.h.b16 %v250
    %v706 = vunpack.c.l.b16 %v251
    %v707 = vunpack.c.h.b16 %v251
    %v708 = vunpack.c.l.b16 %v252
    %v709 = vunpack.c.h.b16 %v252
    %v710 = vunpack.c.l.b16 %v253
    %v711 = vunpack.c.h.b16 %v253
    %v712 = vunpack.c.l.b16 %v254
    %v713 = vunpack.c.h.b16 %v254
    %v714 = vunpack.c.l.b16 %v255
    %v715 = vunpack.c.h.b16 %v255
    %v716 = vunpack.c.l.b16 %v256
    %v717 = vunpack.c.h.b16 %v256
    %v718 = vunpack.c.l.b16 %v257
    %v719 = vunpack.c.h.b16 %v257
    %v720 = vunpack.c.l.b16 %v258
    %v721 = vunpack.c.h.b16 %v258
    %v722 = vunpack.c.l.b16 %v259
    %v723 = vunpack.c.h.b16 %v259
    %v724 = vunpack.c.l.b16 %v260
    %v725 = vunpack.c.h.b16 %v260
    %v726 = vunpack.c.l.b16 %v261
    %v727 = vunpack.c.h.b16 %v261
    %v728 = vunpack.c.l.b16 %v262
    %v729 = vunpack.c.h.b16 %v262
    %v730 = vunpack.c.l.b16 %v263
    %v731 = vunpack.c.h.b16 %v263
    %v732 = vunpack.c.l.b16 %v264
    %v733 = vunpack.c.h.b16 %v264
    %v734 = vunpack.c.l.b16 %v265
    %v735 = vunpack.c.h.b16 %v265
    %v736 = vunpack.c.l.b16 %v266
    %v737 = vunpack.c.h.b16 %v266
    %v738 = vunpack.c.l.b16 %v267
    %v739 = vunpack.c.h.b16 %v267
    %v740 = vunpack.c.l.b16 %v268
    %v741 = vunpack.c.h.b16 %v268
    %v742 = vunpack.c.l.b16 %v269
    %v743 = vunpack.c.h.b16 %v269
    %v744 = vunpack.c.l.b16 %v270
    %v745 = vunpack.c.h.b16 %v270
    %v746 = vunpack.c.l.b16 %v271
    %v747 = vunpack.c.h.b16 %v271
    %v748 = vunpack.c.l.b16 %v272
    %v749 = vunpack.c.h.b16 %v272
    %v750 = vunpack.c.l.b16 %v273
    %v751 = vunpack.c.h.b16 %v273
    %v752 = vunpack.c.l.b16 %v274
    %v753 = vunpack.c.h.b16 %v274
    %v754 = vunpack.c.l.b16 %v275
    %v755 = vunpack.c.h.b16 %v275
    %v756 = vunpack.c.l.b16 %v276
    %v757 = vunpack.c.h.b16 %v276
    %v758 = vunpack.c.l.b16 %v277
    %v759 = vunpack.c.h.b16 %v277
    %v760 = vunpack.c.l.b16 %v278
    %v761 = vunpack.c.h.b16 %v278
    %v762 = vunpack.c.l.b16 %v279
    %v763 = vunpack.c.h.b16 %v279
    %v764 = vunpack.c.l.b16 %v280
    %v765 = vunpack.c.h.b16 %v280
    %v766 = vunpack.c.l.b16 %v281
    %v767 = vunpack.c.h.b16 %v281
    %v768 = vunpack.c.l.b16 %v282
    %v769 = vunpack.c.h.b16 %v282
    %v770 = vunpack.c.l.b16 %v283
    %v771 = vunpack.c.h.b16 %v283
    %v772 = vunpack.c.l.b16 %v284
    %v773 = vunpack.c.h.b16 %v284
    %v774 = vunpack.c.l.b16 %v285
    %v775 = vunpack.c.h.b16 %v285
    %v776 = vunpack.c.l.b16 %v286
    %v777 = vunpack.c.h.b16 %v286
    %v778 = vunpack.c.l.b16 %v287
    %v779 = vunpack.c.h.b16 %v287
    %v780 = vunpack.c.l.b16 %v288
    %v781 = vunpack.c.h.b16 %v288
    %v782 = vunpack.c.l.b16 %v289
    %v783 = vunpack.c.h.b16 %v289
    %v784 = vunpack.c.l.b16 %v290
    %v785 = vunpack.c.h.b16 %v290
    %v786 = vunpack.c.l.b16 %v291
    %v787 = vunpack.c.h.b16 %v291
    %v788 = vunpack.c.l.b16 %v292
    %v789 = vunpack.c.h.b16 %v292
    %v790 = vunpack.c.l.b16 %v293
    %v791 = vunpack.c.h.b16 %v293
    %v792 = vunpack.c.l.b16 %v294
    %v793 = vunpack.c.h.b16 %v294
    %v794 = vunpack.c.l.b16 %v295
    %v795 = vunpack.c.h.b16 %v295
    %v796 = vunpack.c.l.b16 %v296
    %v797 = vunpack.c.h.b16 %v296
    %v798 = vunpack.c.l.b16 %v297
    %v799 = vunpack.c.h.b16 %v297
    %v800 = vunpack.c.l.b16 %v298
    %v801 = vunpack.c.h.b16 %v298
    %v802 = vunpack.c.l.b16 %v299
    %v803 = vunpack.c.h.b16 %v299
    %v804 = vunpack.c.l.b16 %v300
    %v805 = vunpack.c.h.b16 %v300
    %v806 = vunpack.c.l.b16 %v301
    %v807 = vunpack.c.h.b16 %v301
    %v808 = vunpack.c.l.b16 %v302
    %v809 = vunpack.c.h.b16 %v302
    %v810 = vunpack.c.l.b16 %v303
    %v811 = vunpack.c.h.b16 %v303
    %v812 = vunpack.c.l.b16 %v304
    %v813 = vunpack.c.h.b16 %v304
    %v814 = vunpack.c.l.b16 %v305
    %v815 = vunpack.c.h.b16 %v305
    %v816 = vunpack.c.l.b16 %v306
    %v817 = vunpack.c.h.b16 %v306
    %v818 = vunpack.c.l.b16 %v307
    %v819 = vunpack.c.h.b16 %v307
    %v820 = vunpack.c.l.b16 %v308
    %v821 = vunpack.c.h.b16 %v308
    %v822 = vunpack.c.l.b16 %v309
    %v823 = vunpack.c.h.b16 %v309
    %v824 = vunpack.c.l.b16 %v310
    %v825 = vunpack.c.h.b16 %v310
    %v826 = vunpack.c.l.b16 %v311
    %v827 = vunpack.c.h.b16 %v311
    %v828 = vunpack.c.l.b16 %v312
    %v829 = vunpack.c.h.b16 %v312
    %v830 = vunpack.c.l.b16 %v313
    %v831 = vunpack.c.h.b16 %v313
    %v832 = vunpack.c.l.b16 %v314
    %v833 = vunpack.c.h.b16 %v314
    %v834 = vunpack.c.l.b16 %v315
    %v835 = vunpack.c.h.b16 %v315
    %v836 = vunpack.c.l.b16 %v316
    %v837 = vunpack.c.h.b16 %v316
    %v838 = vunpack.c.l.b16 %v317
    %v839 = vunpack.c.h.b16 %v317
    %v840 = vunpack.c.l.b16 %v318
    %v841 = vunpack.c.h.b16 %v318
    %v842 = vunpack.c.l.b16 %v319
    %v843 = vunpack.c.h.b16 %v319
    %v844 = vunpack.c.l.b16 %v320
    %v845 = vunpack.c.h.b16 %v320
    %v846 = vunpack.c.l.b16 %v321
    %v847 = vunpack.c.h.b16 %v321
    %v848 = vunpack.c.l.b16 %v322
    %v849 = vunpack.c.h.b16 %v322
    %v850 = vunpack.c.l.b16 %v323
    %v851 = vunpack.c.h.b16 %v323
    %v852 = vunpack.c.l.b16 %v324
    %v853 = vunpack.c.h.b16 %v324
    %v854 = vunpack.c.l.b16 %v325
    %v855 = vunpack.c.h.b16 %v325
    %v856 = vunpack.c.l.b16 %v326
    %v857 = vunpack.c.h.b16 %v326
    %v858 = vunpack.c.l.b16 %v327
    %v859 = vunpack.c.h.b16 %v327
    %v860 = vunpack.c.l.b16 %v328
    %v861 = vunpack.c.h.b16 %v328
    %v862 = vunpack.c.l.b16 %v329
    %v863 = vunpack.c.h.b16 %v329
    %v864 = vunpack.c.l.b16 %v330
    %v865 = vunpack.c.h.b16 %v330
    %v866 = vunpack.c.l.b16 %v331
    %v867 = vunpack.c.h.b16 %v331
    %v868 = vunpack.c.l.b16 %v332
    %v869 = vunpack.c.h.b16 %v332
    %v870 = vunpack.c.l.b16 %v333
    %v871 = vunpack.c.h.b16 %v333
    %v872 = vunpack.c.l.b16 %v334
    %v873 = vunpack.c.h.b16 %v334
    %v874 = vunpack.c.l.b16 %v335
    %v875 = vunpack.c.h.b16 %v335
    %v876 = vunpack.c.l.b16 %v336
    %v877 = vunpack.c.h.b16 %v336
    %v878 = vunpack.c.l.b16 %v337
    %v879 = vunpack.c.h.b16 %v337
    %v880 = vunpack.c.l.b16 %v338
    %v881 = vunpack.c.h.b16 %v338
    %v882 = vunpack.c.l.b16 %v339
    %v883 = vunpack.c.h.b16 %v339
    %v884 = vunpack.c.l.b16 %v340
    %v885 = vunpack.c.h.b16 %v340
    %v886 = vunpack.c.l.b16 %v341
    %v887 = vunpack.c.h.b16 %v341
    %v888 = vunpack.c.l.b16 %v342
    %v889 = vunpack.c.h.b16 %v342
    %v890 = vunpack.c.l.b16 %v343
    %v891 = vunpack.c.h.b16 %v343
    %v892 = vunpack.c.l.b16 %v344
    %v893 = vunpack.c.h.b16 %v344
    %v894 = vunpack.c.l.b16 %v345
    %v895 = vunpack.c.h.b16 %v345
    %v896 = vunpack.c.l.b16 %v346
    %v897 = vunpack.c.h.b16 %v346
    %v898 = vunpack.c.l.b16 %v347
    %v899 = vunpack.c.h.b16 %v347
    %v900 = vunpack.c.l.b16 %v348
    %v901 = vunpack.c.h.b16 %v348
    %v902 = vunpack.c.l.b16 %v349
    %v903 = vunpack.c.h.b16 %v349
    %v904 = vunpack.c.l.b16 %v350
    %v905 = vunpack.c.h.b16 %v350
    %v906 = vunpack.c.l.b16 %v351
    %v907 = vunpack.c.h.b16 %v351
    %v908 = vunpack.c.l.b16 %v352
    %v909 = vunpack.c.h.b16 %v352
    %v910 = vunpack.c.l.b16 %v353
    %v911 = vunpack.c.h.b16 %v353
    %v912 = vunpack.c.l.b16 %v354
    %v913 = vunpack.c.h.b16 %v354
    %v914 = vunpack.c.l.b16 %v355
    %v915 = vunpack.c.h.b16 %v355
    %v916 = vunpack.c.l.b16 %v356
    %v917 = vunpack.c.h.b16 %v356
    %v918 = vunpack.c.l.b16 %v357
    %v919 = vunpack.c.h.b16 %v357
    %v920 = vunpack.c.l.b16 %v358
    %v921 = vunpack.c.h.b16 %v358
    %v922 = vunpack.c.l.b16 %v359
    %v923 = vunpack.c.h.b16 %v359
    %v924 = vunpack.c.l.b16 %v360
    %v925 = vunpack.c.h.b16 %v360
    %v926 = vunpack.c.l.b16 %v361
    %v927 = vunpack.c.h.b16 %v361
    %v928 = vunpack.c.l.b16 %v362
    %v929 = vunpack.c.h.b16 %v362
    %v930 = vunpack.c.l.b16 %v363
    %v931 = vunpack.c.h.b16 %v363
    %v932 = vunpack.c.l.b16 %v364
    %v933 = vunpack.c.h.b16 %v364
    %v934 = vunpack.c.l.b16 %v365
    %v935 = vunpack.c.h.b16 %v365
    %v936 = vunpack.c.l.b16 %v366
    %v937 = vunpack.c.h.b16 %v366
    %v938 = vunpack.c.l.b16 %v367
    %v939 = vunpack.c.h.b16 %v367
    %v940 = vunpack.c.l.b16 %v368
    %v941 = vunpack.c.h.b16 %v368
    %v942 = vunpack.c.l.b16 %v369
    %v943 = vunpack.c.h.b16 %v369
    %v944 = vunpack.c.l.b16 %v370
    %v945 = vunpack.c.h.b16 %v370
    %v946 = vunpack.c.l.b16 %v371
    %v947 = vunpack.c.h.b16 %v371
    %v948 = vunpack.c.l.b16 %v372
    %v949 = vunpack.c.h.b16 %v372
    %v950 = vunpack.c.l.b16 %v373
    %v951 = vunpack.c.h.b16 %v373
    %v952 = vunpack.c.l.b16 %v374
    %v953 = vunpack.c.h.b16 %v374
    %v954 = vunpack.c.l.b16 %v375
    %v955 = vunpack.c.h.b16 %v375
    %v956 = vunpack.c.l.b16 %v376
    %v957 = vunpack.c.h.b16 %v376
    %v958 = vunpack.c.l.b16 %v377
    %v959 = vunpack.c.h.b16 %v377
    %v960 = vunpack.c.l.b16 %v378
    %v961 = vunpack.c.h.b16 %v378
    %v962 = vunpack.c.l.b16 %v379
    %v963 = vunpack.c.h.b16 %v379
    %v964 = vunpack.c.l.b16 %v380
    %v965 = vunpack.c.h.b16 %v380
    %v966 = vunpack.c.l.b16 %v381
    %v967 = vunpack.c.h.b16 %v381
    %v968 = vunpack.c.l.b16 %v382
    %v969 = vunpack.c.h.b16 %v382
    %v970 = vunpack.c.l.b16 %v383
    %v971 = vunpack.c.h.b16 %v383
    %v972 = vunpack.c.l.b16 %v384
    %v973 = vunpack.c.h.b16 %v384
    %v974 = vunpack.c.l.b16 %v385
    %v975 = vunpack.c.h.b16 %v385
    %v976 = vunpack.c.l.b16 %v386
    %v977 = vunpack.c.h.b16 %v386
    %v978 = vunpack.c.l.b16 %v387
    %v979 = vunpack.c.h.b16 %v387
    %v980 = vunpack.c.l.b16 %v388
    %v981 = vunpack.c.h.b16 %v388
    %v982 = vunpack.c.l.b16 %v389
    %v983 = vunpack.c.h.b16 %v389
    %v984 = vunpack.c.l.b16 %v390
    %v985 = vunpack.c.h.b16 %v390
    %v986 = vunpack.c.l.b16 %v391
    %v987 = vunpack.c.h.b16 %v391
    %v988 = vunpack.c.l.b16 %v392
    %v989 = vunpack.c.h.b16 %v392
    %v990 = vunpack.c.l.b16 %v393
    %v991 = vunpack.c.h.b16 %v393
    %v992 = vpack.c.b16 %v612, %v608
    %v993 = vpack.c.b16 %v613, %v609
    %v994 = vpack.c.b16 %v614, %v610
    %v995 = vpack.c.b16 %v615, %v611
    %v996 = vpack.c.b16 %v620, %v616
    %v997 = vpack.c.b16 %v621, %v617
    %v998 = vpack.c.b16 %v622, %v618
    %v999 = vpack.c.b16 %v623, %v619
    %v1000 = vpack.c.b16 %v628, %v624
    %v1001 = vpack.c.b16 %v629, %v625
    %v1002 = vpack.c.b16 %v630, %v626
    %v1003 = vpack.c.b16 %v631, %v627
    %v1004 = vpack.c.b16 %v636, %v632
    %v1005 = vpack.c.b16 %v637, %v633
    %v1006 = vpack.c.b16 %v638, %v634
    %v1007 = vpack.c.b16 %v639, %v635
    %v1008 = vpack.c.b16 %v644, %v640
    %v1009 = vpack.c.b16 %v645, %v641
    %v1010 = vpack.c.b16 %v646, %v642
    %v1011 = vpack.c.b16 %v647, %v643
    %v1012 = vpack.c.b16 %v652, %v648
    %v1013 = vpack.c.b16 %v653, %v649
    %v1014 = vpack.c.b16 %v654, %v650
    %v1015 = vpack.c.b16 %v655, %v651
    %v1016 = vpack.c.b16 %v660, %v656
    %v1017 = vpack.c.b16 %v661, %v657
    %v1018 = vpack.c.b16 %v662, %v658
    %v1019 = vpack.c.b16 %v663, %v659
    %v1020 = vpack.c.b16 %v668, %v664
    %v1021 = vpack.c.b16 %v669, %v665
    %v1022 = vpack.c.b16 %v670, %v666
    %v1023 = vpack.c.b16 %v671, %v667
    %v1024 = vpack.c.b16 %v676, %v672
    %v1025 = vpack.c.b16 %v677, %v673
    %v1026 = vpack.c.b16 %v678, %v674
    %v1027 = vpack.c.b16 %v679, %v675
    %v1028 = vpack.c.b16 %v684, %v680
    %v1029 = vpack.c.b16 %v685, %v681
    %v1030 = vpack.c.b16 %v686, %v682
    %v1031 = vpack.c.b16 %v687, %v683
    %v1032 = vpack.c.b16 %v692, %v688
    %v1033 = vpack.c.b16 %v693, %v689
    %v1034 = vpack.c.b16 %v694, %v690
    %v1035 = vpack.c.b16 %v695, %v691
    %v1036 = vpack.c.b16 %v700, %v696
    %v1037 = vpack.c.b16 %v701, %v697
    %v1038 = vpack.c.b16 %v702, %v698
    %v1039 = vpack.c.b16 %v703, %v699
    %v1040 = vpack.c.b16 %v708, %v704
    %v1041 = vpack.c.b16 %v709, %v705
    %v1042 = vpack.c.b16 %v710, %v706
    %v1043 = vpack.c.b16 %v711, %v707
    %v1044 = vpack.c.b16 %v716, %v712
    %v1045 = vpack.c.b16 %v717, %v713
    %v1046 = vpack.c.b16 %v718, %v714
    %v1047 = vpack.c.b16 %v719, %v715
    %v1048 = vpack.c.b16 %v724, %v720
    %v1049 = vpack.c.b16 %v725, %v721
    %v1050 = vpack.c.b16 %v726, %v722
    %v1051 = vpack.c.b16 %v727, %v723
    %v1052 = vpack.c.b16 %v732, %v728
    %v1053 = vpack.c.b16 %v733, %v729
    %v1054 = vpack.c.b16 %v734, %v730
    %v1055 = vpack.c.b16 %v735, %v731
    %v1056 = vpack.c.b16 %v740, %v736
    %v1057 = vpack.c.b16 %v741, %v737
    %v1058 = vpack.c.b16 %v742, %v738
    %v1059 = vpack.c.b16 %v743, %v739
    %v1060 = vpack.c.b16 %v748, %v744
    %v1061 = vpack.c.b16 %v749, %v745
    %v1062 = vpack.c.b16 %v750, %v746
    %v1063 = vpack.c.b16 %v751, %v747
    %v1064 = vpack.c.b16 %v756, %v752
    %v1065 = vpack.c.b16 %v757, %v753
    %v1066 = vpack.c.b16 %v758, %v754
    %v1067 = vpack.c.b16 %v759, %v755
    %v1068 = vpack.c.b16 %v764, %v760
    %v1069 = vpack.c.b16 %v765, %v761
    %v1070 = vpack.c.b16 %v766, %v762
    %v1071 = vpack.c.b16 %v767, %v763
    %v1072 = vpack.c.b16 %v772, %v768
    %v1073 = vpack.c.b16 %v773, %v769
    %v1074 = vpack.c.b16 %v774, %v770
    %v1075 = vpack.c.b16 %v775, %v771
    %v1076 = vpack.c.b16 %v780, %v776
    %v1077 = vpack.c.b16 %v781, %v777
    %v1078 = vpack.c.b16 %v782, %v778
    %v1079 = vpack.c.b16 %v783, %v779
    %v1080 = vpack.c.b16 %v788, %v784
    %v1081 = vpack.c.b16 %v789, %v785
    %v1082 = vpack.c.b16 %v790, %v786
    %v1083 = vpack.c.b16 %v791, %v787
    %v1084 = vpack.c.b16 %v796, %v792
    %v1085 = vpack.c.b16 %v797, %v793
    %v1086 = vpack.c.b16 %v798, %v794
    %v1087 = vpack.c.b16 %v799, %v795
    %v1088 = vpack.c.b16 %v804, %v800
    %v1089 = vpack.c.b16 %v805, %v801
    %v1090 = vpack.c.b16 %v806, %v802
    %v1091 = vpack.c.b16 %v807, %v803
    %v1092 = vpack.c.b16 %v812, %v808
    %v1093 = vpack.c.b16 %v813, %v809
    %v1094 = vpack.c.b16 %v814, %v810
    %v1095 = vpack.c.b16 %v815, %v811
    %v1096 = vpack.c.b16 %v820, %v816
    %v1097 = vpack.c.b16 %v821, %v817
    %v1098 = vpack.c.b16 %v822, %v818
    %v1099 = vpack.c.b16 %v823, %v819
    %v1100 = vpack.c.b16 %v828, %v824
    %v1101 = vpack.c.b16 %v829, %v825
    %v1102 = vpack.c.b16 %v830, %v826
    %v1103 = vpack.c.b16 %v831, %v827
    %v1104 = vpack.c.b16 %v836, %v832
    %v1105 = vpack.c.b16 %v837, %v833
    %v1106 = vpack.c.b16 %v838, %v834
    %v1107 = vpack.c.b16 %v839, %v835
    %v1108 = vpack.c.b16 %v844, %v840
    %v1109 = vpack.c.b16 %v845, %v841
    %v1110 = vpack.c.b16 %v846, %v842
    %v1111 = vpack.c.b16 %v847, %v843
    %v1112 = vpack.c.b16 %v852, %v848
    %v1113 = vpack.c.b16 %v853, %v849
    %v1114 = vpack.c.b16 %v854, %v850
    %v1115 = vpack.c.b16 %v855, %v851
    %v1116 = vpack.c.b16 %v860, %v856
    %v1117 = vpack.c.b16 %v861, %v857
    %v1118 = vpack.c.b16 %v862, %v858
    %v1119 = vpack.c.b16 %v863, %v859
    %v1120 = vpack.c.b16 %v868, %v864
    %v1121 = vpack.c.b16 %v869, %v865
    %v1122 = vpack.c.b16 %v870, %v866
    %v1123 = vpack.c.b16 %v871, %v867
    %v1124 = vpack.c.b16 %v876, %v872
    %v1125 = vpack.c.b16 %v877, %v873
    %v1126 = vpack.c.b16 %v878, %v874
    %v1127 = vpack.c.b16 %v879, %v875
    %v1128 = vpack.c.b16 %v884, %v880
    %v1129 = vpack.c.b16 %v885, %v881
    %v1130 = vpack.c.b16 %v886, %v882
    %v1131 = vpack.c.b16 %v887, %v883
    %v1132 = vpack.c.b16 %v892, %v888
    %v1133 = vpack.c.b16 %v893, %v889
    %v1134 = vpack.c.b16 %v894, %v890
    %v1135 = vpack.c.b16 %v895, %v891
    %v1136 = vpack.c.b16 %v900, %v896
    %v1137 = vpack.c.b16 %v901, %v897
    %v1138 = vpack.c.b16 %v902, %v898
    %v1139 = vpack.c.b16 %v903, %v899
    %v1140 = vpack.c.b16 %v908, %v904
    %v1141 = vpack.c.b16 %v909, %v905
    %v1142 = vpack.c.b16 %v910, %v906
    %v1143 = vpack.c.b16 %v911, %v907
    %v1144 = vpack.c.b16 %v916, %v912
    %v1145 = vpack.c.b16 %v917, %v913
    %v1146 = vpack.c.b16 %v918, %v914
    %v1147 = vpack.c.b16 %v919, %v915
    %v1148 = vpack.c.b16 %v924, %v920
    %v1149 = vpack.c.b16 %v925, %v921
    %v1150 = vpack.c.b16 %v926, %v922
    %v1151 = vpack.c.b16 %v927, %v923
    %v1152 = vpack.c.b16 %v932, %v928
    %v1153 = vpack.c.b16 %v933, %v929
    %v1154 = vpack.c.b16 %v934, %v930
    %v1155 = vpack.c.b16 %v935, %v931
    %v1156 = vpack.c.b16 %v940, %v936
    %v1157 = vpack.c.b16 %v941, %v937
    %v1158 = vpack.c.b16 %v942, %v938
    %v1159 = vpack.c.b16 %v943, %v939
    %v1160 = vpack.c.b16 %v948, %v944
    %v1161 = vpack.c.b16 %v949, %v945
    %v1162 = vpack.c.b16 %v950, %v946
    %v1163 = vpack.c.b16 %v951, %v947
    %v1164 = vpack.c.b16 %v956, %v952
    %v1165 = vpack.c.b16 %v957, %v953
    %v1166 = vpack.c.b16 %v958, %v954
    %v1167 = vpack.c.b16 %v959, %v955
    %v1168 = vpack.c.b16 %v964, %v960
    %v1169 = vpack.c.b16 %v965, %v961
    %v1170 = vpack.c.b16 %v966, %v962
    %v1171 = vpack.c.b16 %v967, %v963
    %v1172 = vpack.c.b16 %v972, %v968
    %v1173 = vpack.c.b16 %v973, %v969
    %v1174 = vpack.c.b16 %v974, %v970
    %v1175 = vpack.c.b16 %v975, %v971
    %v1176 = vpack.c.b16 %v980, %v976
    %v1177 = vpack.c.b16 %v981, %v977
    %v1178 = vpack.c.b16 %v982, %v978
    %v1179 = vpack.c.b16 %v983, %v979
    %v1180 = vpack.c.b16 %v988, %v984
    %v1181 = vpack.c.b16 %v989, %v985
    %v1182 = vpack.c.b16 %v990, %v986
    %v1183 = vpack.c.b16 %v991, %v987
    %1376 = vmatprep.subr.bf16.mxu0 %v1021
    %1377 = vmatpush1.bf16.msra.mxu0 %v1020
    %1378 = vmatprep.subr.bf16.mxu0 %v1017
    %1379 = vmatpush1.bf16.msra.mxu0 %v1016
    %1380 = vmatprep.subr.bf16.mxu0 %v1013
    %1381 = vmatpush1.bf16.msra.mxu0 %v1012
    %1382 = vmatprep.subr.bf16.mxu0 %v1009
    %1383 = vmatpush1.bf16.msra.mxu0 %v1008
    %1384 = vmatprep.subr.bf16.mxu0 %v1005
    %1385 = vmatpush1.bf16.msra.mxu0 %v1004
    %1386 = vmatprep.subr.bf16.mxu0 %v1001
    %1387 = vmatpush1.bf16.msra.mxu0 %v1000
    %1388 = vmatprep.subr.bf16.mxu0 %v997
    %1389 = vmatpush1.bf16.msra.mxu0 %v996
    %1390 = vmatprep.subr.bf16.mxu0 %v993
    %1391 = vmatpush1.bf16.msra.mxu0 %v992
    %1392 = vmatprep.subr.bf16.mxu0 %v1053
    %1393 = vmatpush2.bf16.msra.mxu0 %v1052
    %1394 = vmatprep.subr.bf16.mxu0 %v1049
    %1395 = vmatpush2.bf16.msra.mxu0 %v1048
    %1396 = vmatprep.subr.bf16.mxu0 %v1045
    %1397 = vmatpush2.bf16.msra.mxu0 %v1044
    %1398 = vmatprep.subr.bf16.mxu0 %v1041
    %1399 = vmatpush2.bf16.msra.mxu0 %v1040
    %1400 = vmatprep.subr.bf16.mxu0 %v1037
    %1401 = vmatpush2.bf16.msra.mxu0 %v1036
    %1402 = vmatprep.subr.bf16.mxu0 %v1033
    %1403 = vmatpush2.bf16.msra.mxu0 %v1032
    %1404 = vmatprep.subr.bf16.mxu0 %v1029
    %1405 = vmatpush2.bf16.msra.mxu0 %v1028
    %1406 = vmatprep.subr.bf16.mxu0 %v1025
    %1407 = vmatpush2.bf16.msra.mxu0 %v1024
    %1408 = vmatprep.mubr.bf16.mxu0 %v155
    %1409 = vmatmul.mubr.bf16.gmra.mxu0 %v154
    %v1410 = vpop.f32.mrf.mxu0
    %v1411 = vadd.f32 %v399, %v1410
    %v1412 = vpop.f32.mrf.mxu0
    %v1413 = vadd.f32 %v403, %v1412
    %v1414 = vpop.f32.mrf.mxu0
    %v1415 = vadd.f32 %v399, %v1414
    %v1416 = vpop.f32.mrf.mxu0
    %v1417 = vadd.f32 %v403, %v1416
    %1418 = vmatprep.mubr.bf16.mxu0 %v161
    %1419 = vmatmul.mubr.bf16.gmra.mxu0 %v160
    %v1420 = vpop.f32.mrf.mxu0
    %v1421 = vadd.f32 %v399, %v1420
    %v1422 = vpop.f32.mrf.mxu0
    %v1423 = vadd.f32 %v403, %v1422
    %v1424 = vpop.f32.mrf.mxu0
    %v1425 = vadd.f32 %v399, %v1424
    %v1426 = vpop.f32.mrf.mxu0
    %v1427 = vadd.f32 %v403, %v1426
    %1428 = vmatprep.mubr.bf16.mxu0 %v167
    %1429 = vmatmul.mubr.bf16.gmra.mxu0 %v166
    %v1430 = vpop.f32.mrf.mxu0
    %v1431 = vadd.f32 %v399, %v1430
    %v1432 = vpop.f32.mrf.mxu0
    %v1433 = vadd.f32 %v403, %v1432
    %v1434 = vpop.f32.mrf.mxu0
    %v1435 = vadd.f32 %v399, %v1434
    %v1436 = vpop.f32.mrf.mxu0
    %v1437 = vadd.f32 %v403, %v1436
    %1438 = vmatprep.mubr.bf16.mxu0 %v173
    %1439 = vmatmul.mubr.bf16.gmra.mxu0 %v172
    %v1440 = vpop.f32.mrf.mxu0
    %v1441 = vadd.f32 %v399, %v1440
    %v1442 = vpop.f32.mrf.mxu0
    %v1443 = vadd.f32 %v403, %v1442
    %v1444 = vpop.f32.mrf.mxu0
    %v1445 = vadd.f32 %v399, %v1444
    %v1446 = vpop.f32.mrf.mxu0
    %v1447 = vadd.f32 %v403, %v1446
    %1448 = vmatprep.mubr.bf16.mxu0 %v179
    %1449 = vmatmul.mubr.bf16.gmra.mxu0 %v178
    %v1450 = vpop.f32.mrf.mxu0
    %v1451 = vadd.f32 %v399, %v1450
    %v1452 = vpop.f32.mrf.mxu0
    %v1453 = vadd.f32 %v403, %v1452
    %v1454 = vpop.f32.mrf.mxu0
    %v1455 = vadd.f32 %v399, %v1454
    %v1456 = vpop.f32.mrf.mxu0
    %v1457 = vadd.f32 %v403, %v1456
    %1458 = vmatprep.mubr.bf16.mxu0 %v185
    %1459 = vmatmul.mubr.bf16.gmra.mxu0 %v184
    %v1460 = vpop.f32.mrf.mxu0
    %v1461 = vadd.f32 %v399, %v1460
    %v1462 = vpop.f32.mrf.mxu0
    %v1463 = vadd.f32 %v403, %v1462
    %v1464 = vpop.f32.mrf.mxu0
    %v1465 = vadd.f32 %v399, %v1464
    %v1466 = vpop.f32.mrf.mxu0
    %v1467 = vadd.f32 %v403, %v1466
    %1468 = vmatprep.mubr.bf16.mxu0 %v191
    %1469 = vmatmul.mubr.bf16.gmra.mxu0 %v190
    %v1470 = vpop.f32.mrf.mxu0
    %v1471 = vadd.f32 %v399, %v1470
    %v1472 = vpop.f32.mrf.mxu0
    %v1473 = vadd.f32 %v403, %v1472
    %v1474 = vpop.f32.mrf.mxu0
    %v1475 = vadd.f32 %v399, %v1474
    %v1476 = vpop.f32.mrf.mxu0
    %v1477 = vadd.f32 %v403, %v1476
    %1478 = vmatprep.mubr.bf16.mxu0 %v197
    %1479 = vmatmul.mubr.bf16.gmra.mxu0 %v196
    %v1480 = vpop.f32.mrf.mxu0
    %v1481 = vadd.f32 %v399, %v1480
    %v1482 = vpop.f32.mrf.mxu0
    %v1483 = vadd.f32 %v403, %v1482
    %v1484 = vpop.f32.mrf.mxu0
    %v1485 = vadd.f32 %v399, %v1484
    %v1486 = vpop.f32.mrf.mxu0
    %v1487 = vadd.f32 %v403, %v1486
    %1488 = vdwg.mxu0
    %1489 = vmatprep.subr.bf16.mxu0 %v1085
    %1490 = vmatpush1.bf16.msra.mxu0 %v1084
    %1491 = vmatprep.subr.bf16.mxu0 %v1081
    %1492 = vmatpush1.bf16.msra.mxu0 %v1080
    %1493 = vmatprep.subr.bf16.mxu0 %v1077
    %1494 = vmatpush1.bf16.msra.mxu0 %v1076
    %1495 = vmatprep.subr.bf16.mxu0 %v1073
    %1496 = vmatpush1.bf16.msra.mxu0 %v1072
    %1497 = vmatprep.subr.bf16.mxu0 %v1069
    %1498 = vmatpush1.bf16.msra.mxu0 %v1068
    %1499 = vmatprep.subr.bf16.mxu0 %v1065
    %1500 = vmatpush1.bf16.msra.mxu0 %v1064
    %1501 = vmatprep.subr.bf16.mxu0 %v1061
    %1502 = vmatpush1.bf16.msra.mxu0 %v1060
    %1503 = vmatprep.subr.bf16.mxu0 %v1057
    %1504 = vmatpush1.bf16.msra.mxu0 %v1056
    %1505 = vmatprep.subr.bf16.mxu0 %v1117
    %1506 = vmatpush2.bf16.msra.mxu0 %v1116
    %1507 = vmatprep.subr.bf16.mxu0 %v1113
    %1508 = vmatpush2.bf16.msra.mxu0 %v1112
    %1509 = vmatprep.subr.bf16.mxu0 %v1109
    %1510 = vmatpush2.bf16.msra.mxu0 %v1108
    %1511 = vmatprep.subr.bf16.mxu0 %v1105
    %1512 = vmatpush2.bf16.msra.mxu0 %v1104
    %1513 = vmatprep.subr.bf16.mxu0 %v1101
    %1514 = vmatpush2.bf16.msra.mxu0 %v1100
    %1515 = vmatprep.subr.bf16.mxu0 %v1097
    %1516 = vmatpush2.bf16.msra.mxu0 %v1096
    %1517 = vmatprep.subr.bf16.mxu0 %v1093
    %1518 = vmatpush2.bf16.msra.mxu0 %v1092
    %1519 = vmatprep.subr.bf16.mxu0 %v1089
    %1520 = vmatpush2.bf16.msra.mxu0 %v1088
    %1521 = vmatprep.mubr.bf16.mxu0 %v157
    %1522 = vmatmul.mubr.bf16.gmra.mxu0 %v156
    %v1523 = vpop.f32.mrf.mxu0
    %v1524 = vadd.f32 %v1411, %v1523
    %v1525 = vpop.f32.mrf.mxu0
    %v1526 = vadd.f32 %v1413, %v1525
    %v1527 = vpop.f32.mrf.mxu0
    %v1528 = vadd.f32 %v1415, %v1527
    %v1529 = vpop.f32.mrf.mxu0
    %v1530 = vadd.f32 %v1417, %v1529
    %1531 = vmatprep.mubr.bf16.mxu0 %v163
    %1532 = vmatmul.mubr.bf16.gmra.mxu0 %v162
    %v1533 = vpop.f32.mrf.mxu0
    %v1534 = vadd.f32 %v1421, %v1533
    %v1535 = vpop.f32.mrf.mxu0
    %v1536 = vadd.f32 %v1423, %v1535
    %v1537 = vpop.f32.mrf.mxu0
    %v1538 = vadd.f32 %v1425, %v1537
    %v1539 = vpop.f32.mrf.mxu0
    %v1540 = vadd.f32 %v1427, %v1539
    %1541 = vmatprep.mubr.bf16.mxu0 %v169
    %1542 = vmatmul.mubr.bf16.gmra.mxu0 %v168
    %v1543 = vpop.f32.mrf.mxu0
    %v1544 = vadd.f32 %v1431, %v1543
    %v1545 = vpop.f32.mrf.mxu0
    %v1546 = vadd.f32 %v1433, %v1545
    %v1547 = vpop.f32.mrf.mxu0
    %v1548 = vadd.f32 %v1435, %v1547
    %v1549 = vpop.f32.mrf.mxu0
    %v1550 = vadd.f32 %v1437, %v1549
    %1551 = vmatprep.mubr.bf16.mxu0 %v175
    %1552 = vmatmul.mubr.bf16.gmra.mxu0 %v174
    %v1553 = vpop.f32.mrf.mxu0
    %v1554 = vadd.f32 %v1441, %v1553
    %v1555 = vpop.f32.mrf.mxu0
    %v1556 = vadd.f32 %v1443, %v1555
    %v1557 = vpop.f32.mrf.mxu0
    %v1558 = vadd.f32 %v1445, %v1557
    %v1559 = vpop.f32.mrf.mxu0
    %v1560 = vadd.f32 %v1447, %v1559
    %1561 = vmatprep.mubr.bf16.mxu0 %v181
    %1562 = vmatmul.mubr.bf16.gmra.mxu0 %v180
    %v1563 = vpop.f32.mrf.mxu0
    %v1564 = vadd.f32 %v1451, %v1563
    %v1565 = vpop.f32.mrf.mxu0
    %v1566 = vadd.f32 %v1453, %v1565
    %v1567 = vpop.f32.mrf.mxu0
    %v1568 = vadd.f32 %v1455, %v1567
    %v1569 = vpop.f32.mrf.mxu0
    %v1570 = vadd.f32 %v1457, %v1569
    %1571 = vmatprep.mubr.bf16.mxu0 %v187
    %1572 = vmatmul.mubr.bf16.gmra.mxu0 %v186
    %v1573 = vpop.f32.mrf.mxu0
    %v1574 = vadd.f32 %v1461, %v1573
    %v1575 = vpop.f32.mrf.mxu0
    %v1576 = vadd.f32 %v1463, %v1575
    %v1577 = vpop.f32.mrf.mxu0
    %v1578 = vadd.f32 %v1465, %v1577
    %v1579 = vpop.f32.mrf.mxu0
    %v1580 = vadd.f32 %v1467, %v1579
    %1581 = vmatprep.mubr.bf16.mxu0 %v193
    %1582 = vmatmul.mubr.bf16.gmra.mxu0 %v192
    %v1583 = vpop.f32.mrf.mxu0
    %v1584 = vadd.f32 %v1471, %v1583
    %v1585 = vpop.f32.mrf.mxu0
    %v1586 = vadd.f32 %v1473, %v1585
    %v1587 = vpop.f32.mrf.mxu0
    %v1588 = vadd.f32 %v1475, %v1587
    %v1589 = vpop.f32.mrf.mxu0
    %v1590 = vadd.f32 %v1477, %v1589
    %1591 = vmatprep.mubr.bf16.mxu0 %v199
    %1592 = vmatmul.mubr.bf16.gmra.mxu0 %v198
    %v1593 = vpop.f32.mrf.mxu0
    %v1594 = vadd.f32 %v1481, %v1593
    %v1595 = vpop.f32.mrf.mxu0
    %v1596 = vadd.f32 %v1483, %v1595
    %v1597 = vpop.f32.mrf.mxu0
    %v1598 = vadd.f32 %v1485, %v1597
    %v1599 = vpop.f32.mrf.mxu0
    %v1600 = vadd.f32 %v1487, %v1599
    %1601 = vdwg.mxu0
    %1602 = vmatprep.subr.bf16.mxu0 %v1149
    %1603 = vmatpush1.bf16.msra.mxu0 %v1148
    %1604 = vmatprep.subr.bf16.mxu0 %v1145
    %1605 = vmatpush1.bf16.msra.mxu0 %v1144
    %1606 = vmatprep.subr.bf16.mxu0 %v1141
    %1607 = vmatpush1.bf16.msra.mxu0 %v1140
    %1608 = vmatprep.subr.bf16.mxu0 %v1137
    %1609 = vmatpush1.bf16.msra.mxu0 %v1136
    %1610 = vmatprep.subr.bf16.mxu0 %v1133
    %1611 = vmatpush1.bf16.msra.mxu0 %v1132
    %1612 = vmatprep.subr.bf16.mxu0 %v1129
    %1613 = vmatpush1.bf16.msra.mxu0 %v1128
    %1614 = vmatprep.subr.bf16.mxu0 %v1125
    %1615 = vmatpush1.bf16.msra.mxu0 %v1124
    %1616 = vmatprep.subr.bf16.mxu0 %v1121
    %1617 = vmatpush1.bf16.msra.mxu0 %v1120
    %1618 = vmatprep.subr.bf16.mxu0 %v1181
    %1619 = vmatpush2.bf16.msra.mxu0 %v1180
    %1620 = vmatprep.subr.bf16.mxu0 %v1177
    %1621 = vmatpush2.bf16.msra.mxu0 %v1176
    %1622 = vmatprep.subr.bf16.mxu0 %v1173
    %1623 = vmatpush2.bf16.msra.mxu0 %v1172
    %1624 = vmatprep.subr.bf16.mxu0 %v1169
    %1625 = vmatpush2.bf16.msra.mxu0 %v1168
    %1626 = vmatprep.subr.bf16.mxu0 %v1165
    %1627 = vmatpush2.bf16.msra.mxu0 %v1164
    %1628 = vmatprep.subr.bf16.mxu0 %v1161
    %1629 = vmatpush2.bf16.msra.mxu0 %v1160
    %1630 = vmatprep.subr.bf16.mxu0 %v1157
    %1631 = vmatpush2.bf16.msra.mxu0 %v1156
    %1632 = vmatprep.subr.bf16.mxu0 %v1153
    %1633 = vmatpush2.bf16.msra.mxu0 %v1152
    %1634 = vmatprep.mubr.bf16.mxu0 %v159
    %1635 = vmatmul.mubr.bf16.gmra.mxu0 %v158
    %v1636 = vpop.f32.mrf.mxu0
    %v1637 = vadd.f32 %v1524, %v1636
    %v1638 = vpop.f32.mrf.mxu0
    %v1639 = vadd.f32 %v1526, %v1638
    %v1640 = vpop.f32.mrf.mxu0
    %v1641 = vadd.f32 %v1528, %v1640
    %v1642 = vpop.f32.mrf.mxu0
    %v1643 = vadd.f32 %v1530, %v1642
    %1644 = vmatprep.mubr.bf16.mxu0 %v165
    %1645 = vmatmul.mubr.bf16.gmra.mxu0 %v164
    %v1646 = vpop.f32.mrf.mxu0
    %v1647 = vadd.f32 %v1534, %v1646
    %v1648 = vpop.f32.mrf.mxu0
    %v1649 = vadd.f32 %v1536, %v1648
    %v1650 = vpop.f32.mrf.mxu0
    %v1651 = vadd.f32 %v1538, %v1650
    %v1652 = vpop.f32.mrf.mxu0
    %v1653 = vadd.f32 %v1540, %v1652
    %1654 = vmatprep.mubr.bf16.mxu0 %v171
    %1655 = vmatmul.mubr.bf16.gmra.mxu0 %v170
    %v1656 = vpop.f32.mrf.mxu0
    %v1657 = vadd.f32 %v1544, %v1656
    %v1658 = vpop.f32.mrf.mxu0
    %v1659 = vadd.f32 %v1546, %v1658
    %v1660 = vpop.f32.mrf.mxu0
    %v1661 = vadd.f32 %v1548, %v1660
    %v1662 = vpop.f32.mrf.mxu0
    %v1663 = vadd.f32 %v1550, %v1662
    %1664 = vmatprep.mubr.bf16.mxu0 %v177
    %1665 = vmatmul.mubr.bf16.gmra.mxu0 %v176
    %v1666 = vpop.f32.mrf.mxu0
    %v1667 = vadd.f32 %v1554, %v1666
    %v1668 = vpop.f32.mrf.mxu0
    %v1669 = vadd.f32 %v1556, %v1668
    %v1670 = vpop.f32.mrf.mxu0
    %v1671 = vadd.f32 %v1558, %v1670
    %v1672 = vpop.f32.mrf.mxu0
    %v1673 = vadd.f32 %v1560, %v1672
    %1674 = vmatprep.mubr.bf16.mxu0 %v183
    %1675 = vmatmul.mubr.bf16.gmra.mxu0 %v182
    %v1676 = vpop.f32.mrf.mxu0
    %v1677 = vadd.f32 %v1564, %v1676
    %v1678 = vpop.f32.mrf.mxu0
    %v1679 = vadd.f32 %v1566, %v1678
    %v1680 = vpop.f32.mrf.mxu0
    %v1681 = vadd.f32 %v1568, %v1680
    %v1682 = vpop.f32.mrf.mxu0
    %v1683 = vadd.f32 %v1570, %v1682
    %1684 = vmatprep.mubr.bf16.mxu0 %v189
    %1685 = vmatmul.mubr.bf16.gmra.mxu0 %v188
    %v1686 = vpop.f32.mrf.mxu0
    %v1687 = vadd.f32 %v1574, %v1686
    %v1688 = vpop.f32.mrf.mxu0
    %v1689 = vadd.f32 %v1576, %v1688
    %v1690 = vpop.f32.mrf.mxu0
    %v1691 = vadd.f32 %v1578, %v1690
    %v1692 = vpop.f32.mrf.mxu0
    %v1693 = vadd.f32 %v1580, %v1692
    %1694 = vmatprep.mubr.bf16.mxu0 %v195
    %1695 = vmatmul.mubr.bf16.gmra.mxu0 %v194
    %v1696 = vpop.f32.mrf.mxu0
    %v1697 = vadd.f32 %v1584, %v1696
    %v1698 = vpop.f32.mrf.mxu0
    %v1699 = vadd.f32 %v1586, %v1698
    %v1700 = vpop.f32.mrf.mxu0
    %v1701 = vadd.f32 %v1588, %v1700
    %v1702 = vpop.f32.mrf.mxu0
    %v1703 = vadd.f32 %v1590, %v1702
    %1704 = vmatprep.mubr.bf16.mxu0 %v201
    %1705 = vmatmul.mubr.bf16.gmra.mxu0 %v200
    %v1706 = vpop.f32.mrf.mxu0
    %v1707 = vadd.f32 %v1594, %v1706
    %v1708 = vpop.f32.mrf.mxu0
    %v1709 = vadd.f32 %v1596, %v1708
    %v1710 = vpop.f32.mrf.mxu0
    %v1711 = vadd.f32 %v1598, %v1710
    %v1712 = vpop.f32.mrf.mxu0
    %v1713 = vadd.f32 %v1600, %v1712
    %1714 = vdwg.mxu0
    %1715 = vmatprep.subr.bf16.mxu0 %v1023
    %1716 = vmatpush1.bf16.msra.mxu0 %v1022
    %1717 = vmatprep.subr.bf16.mxu0 %v1019
    %1718 = vmatpush1.bf16.msra.mxu0 %v1018
    %1719 = vmatprep.subr.bf16.mxu0 %v1015
    %1720 = vmatpush1.bf16.msra.mxu0 %v1014
    %1721 = vmatprep.subr.bf16.mxu0 %v1011
    %1722 = vmatpush1.bf16.msra.mxu0 %v1010
    %1723 = vmatprep.subr.bf16.mxu0 %v1007
    %1724 = vmatpush1.bf16.msra.mxu0 %v1006
    %1725 = vmatprep.subr.bf16.mxu0 %v1003
    %1726 = vmatpush1.bf16.msra.mxu0 %v1002
    %1727 = vmatprep.subr.bf16.mxu0 %v999
    %1728 = vmatpush1.bf16.msra.mxu0 %v998
    %1729 = vmatprep.subr.bf16.mxu0 %v995
    %1730 = vmatpush1.bf16.msra.mxu0 %v994
    %1731 = vmatprep.subr.bf16.mxu0 %v1055
    %1732 = vmatpush2.bf16.msra.mxu0 %v1054
    %1733 = vmatprep.subr.bf16.mxu0 %v1051
    %1734 = vmatpush2.bf16.msra.mxu0 %v1050
    %1735 = vmatprep.subr.bf16.mxu0 %v1047
    %1736 = vmatpush2.bf16.msra.mxu0 %v1046
    %1737 = vmatprep.subr.bf16.mxu0 %v1043
    %1738 = vmatpush2.bf16.msra.mxu0 %v1042
    %1739 = vmatprep.subr.bf16.mxu0 %v1039
    %1740 = vmatpush2.bf16.msra.mxu0 %v1038
    %1741 = vmatprep.subr.bf16.mxu0 %v1035
    %1742 = vmatpush2.bf16.msra.mxu0 %v1034
    %1743 = vmatprep.subr.bf16.mxu0 %v1031
    %1744 = vmatpush2.bf16.msra.mxu0 %v1030
    %1745 = vmatprep.subr.bf16.mxu0 %v1027
    %1746 = vmatpush2.bf16.msra.mxu0 %v1026
    %1747 = vmatprep.mubr.bf16.mxu0 %v155
    %1748 = vmatmul.mubr.bf16.gmra.mxu0 %v154
    %v1749 = vpop.f32.mrf.mxu0
    %v1750 = vadd.f32 %v407, %v1749
    %v1751 = vpop.f32.mrf.mxu0
    %v1752 = vadd.f32 %v411, %v1751
    %v1753 = vpop.f32.mrf.mxu0
    %v1754 = vadd.f32 %v407, %v1753
    %v1755 = vpop.f32.mrf.mxu0
    %v1756 = vadd.f32 %v411, %v1755
    %1757 = vmatprep.mubr.bf16.mxu0 %v161
    %1758 = vmatmul.mubr.bf16.gmra.mxu0 %v160
    %v1759 = vpop.f32.mrf.mxu0
    %v1760 = vadd.f32 %v407, %v1759
    %v1761 = vpop.f32.mrf.mxu0
    %v1762 = vadd.f32 %v411, %v1761
    %v1763 = vpop.f32.mrf.mxu0
    %v1764 = vadd.f32 %v407, %v1763
    %v1765 = vpop.f32.mrf.mxu0
    %v1766 = vadd.f32 %v411, %v1765
    %1767 = vmatprep.mubr.bf16.mxu0 %v167
    %1768 = vmatmul.mubr.bf16.gmra.mxu0 %v166
    %v1769 = vpop.f32.mrf.mxu0
    %v1770 = vadd.f32 %v407, %v1769
    %v1771 = vpop.f32.mrf.mxu0
    %v1772 = vadd.f32 %v411, %v1771
    %v1773 = vpop.f32.mrf.mxu0
    %v1774 = vadd.f32 %v407, %v1773
    %v1775 = vpop.f32.mrf.mxu0
    %v1776 = vadd.f32 %v411, %v1775
    %1777 = vmatprep.mubr.bf16.mxu0 %v173
    %1778 = vmatmul.mubr.bf16.gmra.mxu0 %v172
    %v1779 = vpop.f32.mrf.mxu0
    %v1780 = vadd.f32 %v407, %v1779
    %v1781 = vpop.f32.mrf.mxu0
    %v1782 = vadd.f32 %v411, %v1781
    %v1783 = vpop.f32.mrf.mxu0
    %v1784 = vadd.f32 %v407, %v1783
    %v1785 = vpop.f32.mrf.mxu0
    %v1786 = vadd.f32 %v411, %v1785
    %1787 = vmatprep.mubr.bf16.mxu0 %v179
    %1788 = vmatmul.mubr.bf16.gmra.mxu0 %v178
    %v1789 = vpop.f32.mrf.mxu0
    %v1790 = vadd.f32 %v407, %v1789
    %v1791 = vpop.f32.mrf.mxu0
    %v1792 = vadd.f32 %v411, %v1791
    %v1793 = vpop.f32.mrf.mxu0
    %v1794 = vadd.f32 %v407, %v1793
    %v1795 = vpop.f32.mrf.mxu0
    %v1796 = vadd.f32 %v411, %v1795
    %1797 = vmatprep.mubr.bf16.mxu0 %v185
    %1798 = vmatmul.mubr.bf16.gmra.mxu0 %v184
    %v1799 = vpop.f32.mrf.mxu0
    %v1800 = vadd.f32 %v407, %v1799
    %v1801 = vpop.f32.mrf.mxu0
    %v1802 = vadd.f32 %v411, %v1801
    %v1803 = vpop.f32.mrf.mxu0
    %v1804 = vadd.f32 %v407, %v1803
    %v1805 = vpop.f32.mrf.mxu0
    %v1806 = vadd.f32 %v411, %v1805
    %1807 = vmatprep.mubr.bf16.mxu0 %v191
    %1808 = vmatmul.mubr.bf16.gmra.mxu0 %v190
    %v1809 = vpop.f32.mrf.mxu0
    %v1810 = vadd.f32 %v407, %v1809
    %v1811 = vpop.f32.mrf.mxu0
    %v1812 = vadd.f32 %v411, %v1811
    %v1813 = vpop.f32.mrf.mxu0
    %v1814 = vadd.f32 %v407, %v1813
    %v1815 = vpop.f32.mrf.mxu0
    %v1816 = vadd.f32 %v411, %v1815
    %1817 = vmatprep.mubr.bf16.mxu0 %v197
    %1818 = vmatmul.mubr.bf16.gmra.mxu0 %v196
    %v1819 = vpop.f32.mrf.mxu0
    %v1820 = vadd.f32 %v407, %v1819
    %v1821 = vpop.f32.mrf.mxu0
    %v1822 = vadd.f32 %v411, %v1821
    %v1823 = vpop.f32.mrf.mxu0
    %v1824 = vadd.f32 %v407, %v1823
    %v1825 = vpop.f32.mrf.mxu0
    %v1826 = vadd.f32 %v411, %v1825
    %1827 = vdwg.mxu0
    %1828 = vmatprep.subr.bf16.mxu0 %v1087
    %1829 = vmatpush1.bf16.msra.mxu0 %v1086
    %1830 = vmatprep.subr.bf16.mxu0 %v1083
    %1831 = vmatpush1.bf16.msra.mxu0 %v1082
    %1832 = vmatprep.subr.bf16.mxu0 %v1079
    %1833 = vmatpush1.bf16.msra.mxu0 %v1078
    %1834 = vmatprep.subr.bf16.mxu0 %v1075
    %1835 = vmatpush1.bf16.msra.mxu0 %v1074
    %1836 = vmatprep.subr.bf16.mxu0 %v1071
    %1837 = vmatpush1.bf16.msra.mxu0 %v1070
    %1838 = vmatprep.subr.bf16.mxu0 %v1067
    %1839 = vmatpush1.bf16.msra.mxu0 %v1066
    %1840 = vmatprep.subr.bf16.mxu0 %v1063
    %1841 = vmatpush1.bf16.msra.mxu0 %v1062
    %1842 = vmatprep.subr.bf16.mxu0 %v1059
    %1843 = vmatpush1.bf16.msra.mxu0 %v1058
    %1844 = vmatprep.subr.bf16.mxu0 %v1119
    %1845 = vmatpush2.bf16.msra.mxu0 %v1118
    %1846 = vmatprep.subr.bf16.mxu0 %v1115
    %1847 = vmatpush2.bf16.msra.mxu0 %v1114
    %1848 = vmatprep.subr.bf16.mxu0 %v1111
    %1849 = vmatpush2.bf16.msra.mxu0 %v1110
    %1850 = vmatprep.subr.bf16.mxu0 %v1107
    %1851 = vmatpush2.bf16.msra.mxu0 %v1106
    %1852 = vmatprep.subr.bf16.mxu0 %v1103
    %1853 = vmatpush2.bf16.msra.mxu0 %v1102
    %1854 = vmatprep.subr.bf16.mxu0 %v1099
    %1855 = vmatpush2.bf16.msra.mxu0 %v1098
    %1856 = vmatprep.subr.bf16.mxu0 %v1095
    %1857 = vmatpush2.bf16.msra.mxu0 %v1094
    %1858 = vmatprep.subr.bf16.mxu0 %v1091
    %1859 = vmatpush2.bf16.msra.mxu0 %v1090
    %1860 = vmatprep.mubr.bf16.mxu0 %v157
    %1861 = vmatmul.mubr.bf16.gmra.mxu0 %v156
    %v1862 = vpop.f32.mrf.mxu0
    %v1863 = vadd.f32 %v1750, %v1862
    %v1864 = vpop.f32.mrf.mxu0
    %v1865 = vadd.f32 %v1752, %v1864
    %v1866 = vpop.f32.mrf.mxu0
    %v1867 = vadd.f32 %v1754, %v1866
    %v1868 = vpop.f32.mrf.mxu0
    %v1869 = vadd.f32 %v1756, %v1868
    %1870 = vmatprep.mubr.bf16.mxu0 %v163
    %1871 = vmatmul.mubr.bf16.gmra.mxu0 %v162
    %v1872 = vpop.f32.mrf.mxu0
    %v1873 = vadd.f32 %v1760, %v1872
    %v1874 = vpop.f32.mrf.mxu0
    %v1875 = vadd.f32 %v1762, %v1874
    %v1876 = vpop.f32.mrf.mxu0
    %v1877 = vadd.f32 %v1764, %v1876
    %v1878 = vpop.f32.mrf.mxu0
    %v1879 = vadd.f32 %v1766, %v1878
    %1880 = vmatprep.mubr.bf16.mxu0 %v169
    %1881 = vmatmul.mubr.bf16.gmra.mxu0 %v168
    %v1882 = vpop.f32.mrf.mxu0
    %v1883 = vadd.f32 %v1770, %v1882
    %v1884 = vpop.f32.mrf.mxu0
    %v1885 = vadd.f32 %v1772, %v1884
    %v1886 = vpop.f32.mrf.mxu0
    %v1887 = vadd.f32 %v1774, %v1886
    %v1888 = vpop.f32.mrf.mxu0
    %v1889 = vadd.f32 %v1776, %v1888
    %1890 = vmatprep.mubr.bf16.mxu0 %v175
    %1891 = vmatmul.mubr.bf16.gmra.mxu0 %v174
    %v1892 = vpop.f32.mrf.mxu0
    %v1893 = vadd.f32 %v1780, %v1892
    %v1894 = vpop.f32.mrf.mxu0
    %v1895 = vadd.f32 %v1782, %v1894
    %v1896 = vpop.f32.mrf.mxu0
    %v1897 = vadd.f32 %v1784, %v1896
    %v1898 = vpop.f32.mrf.mxu0
    %v1899 = vadd.f32 %v1786, %v1898
    %1900 = vmatprep.mubr.bf16.mxu0 %v181
    %1901 = vmatmul.mubr.bf16.gmra.mxu0 %v180
    %v1902 = vpop.f32.mrf.mxu0
    %v1903 = vadd.f32 %v1790, %v1902
    %v1904 = vpop.f32.mrf.mxu0
    %v1905 = vadd.f32 %v1792, %v1904
    %v1906 = vpop.f32.mrf.mxu0
    %v1907 = vadd.f32 %v1794, %v1906
    %v1908 = vpop.f32.mrf.mxu0
    %v1909 = vadd.f32 %v1796, %v1908
    %1910 = vmatprep.mubr.bf16.mxu0 %v187
    %1911 = vmatmul.mubr.bf16.gmra.mxu0 %v186
    %v1912 = vpop.f32.mrf.mxu0
    %v1913 = vadd.f32 %v1800, %v1912
    %v1914 = vpop.f32.mrf.mxu0
    %v1915 = vadd.f32 %v1802, %v1914
    %v1916 = vpop.f32.mrf.mxu0
    %v1917 = vadd.f32 %v1804, %v1916
    %v1918 = vpop.f32.mrf.mxu0
    %v1919 = vadd.f32 %v1806, %v1918
    %1920 = vmatprep.mubr.bf16.mxu0 %v193
    %1921 = vmatmul.mubr.bf16.gmra.mxu0 %v192
    %v1922 = vpop.f32.mrf.mxu0
    %v1923 = vadd.f32 %v1810, %v1922
    %v1924 = vpop.f32.mrf.mxu0
    %v1925 = vadd.f32 %v1812, %v1924
    %v1926 = vpop.f32.mrf.mxu0
    %v1927 = vadd.f32 %v1814, %v1926
    %v1928 = vpop.f32.mrf.mxu0
    %v1929 = vadd.f32 %v1816, %v1928
    %1930 = vmatprep.mubr.bf16.mxu0 %v199
    %1931 = vmatmul.mubr.bf16.gmra.mxu0 %v198
    %v1932 = vpop.f32.mrf.mxu0
    %v1933 = vadd.f32 %v1820, %v1932
    %v1934 = vpop.f32.mrf.mxu0
    %v1935 = vadd.f32 %v1822, %v1934
    %v1936 = vpop.f32.mrf.mxu0
    %v1937 = vadd.f32 %v1824, %v1936
    %v1938 = vpop.f32.mrf.mxu0
    %v1939 = vadd.f32 %v1826, %v1938
    %1940 = vdwg.mxu0
    %1941 = vmatprep.subr.bf16.mxu0 %v1151
    %1942 = vmatpush1.bf16.msra.mxu0 %v1150
    %1943 = vmatprep.subr.bf16.mxu0 %v1147
    %1944 = vmatpush1.bf16.msra.mxu0 %v1146
    %1945 = vmatprep.subr.bf16.mxu0 %v1143
    %1946 = vmatpush1.bf16.msra.mxu0 %v1142
    %1947 = vmatprep.subr.bf16.mxu0 %v1139
    %1948 = vmatpush1.bf16.msra.mxu0 %v1138
    %1949 = vmatprep.subr.bf16.mxu0 %v1135
    %1950 = vmatpush1.bf16.msra.mxu0 %v1134
    %1951 = vmatprep.subr.bf16.mxu0 %v1131
    %1952 = vmatpush1.bf16.msra.mxu0 %v1130
    %1953 = vmatprep.subr.bf16.mxu0 %v1127
    %1954 = vmatpush1.bf16.msra.mxu0 %v1126
    %1955 = vmatprep.subr.bf16.mxu0 %v1123
    %1956 = vmatpush1.bf16.msra.mxu0 %v1122
    %1957 = vmatprep.subr.bf16.mxu0 %v1183
    %1958 = vmatpush2.bf16.msra.mxu0 %v1182
    %1959 = vmatprep.subr.bf16.mxu0 %v1179
    %1960 = vmatpush2.bf16.msra.mxu0 %v1178
    %1961 = vmatprep.subr.bf16.mxu0 %v1175
    %1962 = vmatpush2.bf16.msra.mxu0 %v1174
    %1963 = vmatprep.subr.bf16.mxu0 %v1171
    %1964 = vmatpush2.bf16.msra.mxu0 %v1170
    %1965 = vmatprep.subr.bf16.mxu0 %v1167
    %1966 = vmatpush2.bf16.msra.mxu0 %v1166
    %1967 = vmatprep.subr.bf16.mxu0 %v1163
    %1968 = vmatpush2.bf16.msra.mxu0 %v1162
    %1969 = vmatprep.subr.bf16.mxu0 %v1159
    %1970 = vmatpush2.bf16.msra.mxu0 %v1158
    %1971 = vmatprep.subr.bf16.mxu0 %v1155
    %1972 = vmatpush2.bf16.msra.mxu0 %v1154
    %1973 = vmatprep.mubr.bf16.mxu0 %v159
    %1974 = vmatmul.mubr.bf16.gmra.mxu0 %v158
    %v1975 = vpop.f32.mrf.mxu0
    %v1976 = vadd.f32 %v1863, %v1975
    %v1977 = vpop.f32.mrf.mxu0
    %v1978 = vadd.f32 %v1865, %v1977
    %v1979 = vpop.f32.mrf.mxu0
    %v1980 = vadd.f32 %v1867, %v1979
    %v1981 = vpop.f32.mrf.mxu0
    %v1982 = vadd.f32 %v1869, %v1981
    %1983 = vmatprep.mubr.bf16.mxu0 %v165
    %1984 = vmatmul.mubr.bf16.gmra.mxu0 %v164
    %v1985 = vpop.f32.mrf.mxu0
    %v1986 = vadd.f32 %v1873, %v1985
    %v1987 = vpop.f32.mrf.mxu0
    %v1988 = vadd.f32 %v1875, %v1987
    %v1989 = vpop.f32.mrf.mxu0
    %v1990 = vadd.f32 %v1877, %v1989
    %v1991 = vpop.f32.mrf.mxu0
    %v1992 = vadd.f32 %v1879, %v1991
    %1993 = vmatprep.mubr.bf16.mxu0 %v171
    %1994 = vmatmul.mubr.bf16.gmra.mxu0 %v170
    %v1995 = vpop.f32.mrf.mxu0
    %v1996 = vadd.f32 %v1883, %v1995
    %v1997 = vpop.f32.mrf.mxu0
    %v1998 = vadd.f32 %v1885, %v1997
    %v1999 = vpop.f32.mrf.mxu0
    %v2000 = vadd.f32 %v1887, %v1999
    %v2001 = vpop.f32.mrf.mxu0
    %v2002 = vadd.f32 %v1889, %v2001
    %2003 = vmatprep.mubr.bf16.mxu0 %v177
    %2004 = vmatmul.mubr.bf16.gmra.mxu0 %v176
    %v2005 = vpop.f32.mrf.mxu0
    %v2006 = vadd.f32 %v1893, %v2005
    %v2007 = vpop.f32.mrf.mxu0
    %v2008 = vadd.f32 %v1895, %v2007
    %v2009 = vpop.f32.mrf.mxu0
    %v2010 = vadd.f32 %v1897, %v2009
    %v2011 = vpop.f32.mrf.mxu0
    %v2012 = vadd.f32 %v1899, %v2011
    %2013 = vmatprep.mubr.bf16.mxu0 %v183
    %2014 = vmatmul.mubr.bf16.gmra.mxu0 %v182
    %v2015 = vpop.f32.mrf.mxu0
    %v2016 = vadd.f32 %v1903, %v2015
    %v2017 = vpop.f32.mrf.mxu0
    %v2018 = vadd.f32 %v1905, %v2017
    %v2019 = vpop.f32.mrf.mxu0
    %v2020 = vadd.f32 %v1907, %v2019
    %v2021 = vpop.f32.mrf.mxu0
    %v2022 = vadd.f32 %v1909, %v2021
    %2023 = vmatprep.mubr.bf16.mxu0 %v189
    %2024 = vmatmul.mubr.bf16.gmra.mxu0 %v188
    %v2025 = vpop.f32.mrf.mxu0
    %v2026 = vadd.f32 %v1913, %v2025
    %v2027 = vpop.f32.mrf.mxu0
    %v2028 = vadd.f32 %v1915, %v2027
    %v2029 = vpop.f32.mrf.mxu0
    %v2030 = vadd.f32 %v1917, %v2029
    %v2031 = vpop.f32.mrf.mxu0
    %v2032 = vadd.f32 %v1919, %v2031
    %2033 = vmatprep.mubr.bf16.mxu0 %v195
    %2034 = vmatmul.mubr.bf16.gmra.mxu0 %v194
    %v2035 = vpop.f32.mrf.mxu0
    %v2036 = vadd.f32 %v1923, %v2035
    %v2037 = vpop.f32.mrf.mxu0
    %v2038 = vadd.f32 %v1925, %v2037
    %v2039 = vpop.f32.mrf.mxu0
    %v2040 = vadd.f32 %v1927, %v2039
    %v2041 = vpop.f32.mrf.mxu0
    %v2042 = vadd.f32 %v1929, %v2041
    %2043 = vmatprep.mubr.bf16.mxu0 %v201
    %2044 = vmatmul.mubr.bf16.gmra.mxu0 %v200
    %v2045 = vpop.f32.mrf.mxu0
    %v2046 = vadd.f32 %v1933, %v2045
    %v2047 = vpop.f32.mrf.mxu0
    %v2048 = vadd.f32 %v1935, %v2047
    %v2049 = vpop.f32.mrf.mxu0
    %v2050 = vadd.f32 %v1937, %v2049
    %v2051 = vpop.f32.mrf.mxu0
    %v2052 = vadd.f32 %v1939, %v2051
    %2053 = vdwg.mxu0
    %v2054 = vmax.f32 %v1637, 0.0
    %v2055 = vmax.f32 %v1639, 0.0
    %v2056 = vmax.f32 %v1976, 0.0
    %v2057 = vmax.f32 %v1978, 0.0
    %v2058 = vmax.f32 %v1641, 0.0
    %v2059 = vmax.f32 %v1643, 0.0
    %v2060 = vmax.f32 %v1980, 0.0
    %v2061 = vmax.f32 %v1982, 0.0
    %v2062 = vmax.f32 %v1647, 0.0
    %v2063 = vmax.f32 %v1649, 0.0
    %v2064 = vmax.f32 %v1986, 0.0
    %v2065 = vmax.f32 %v1988, 0.0
    %v2066 = vmax.f32 %v1651, 0.0
    %v2067 = vmax.f32 %v1653, 0.0
    %v2068 = vmax.f32 %v1990, 0.0
    %v2069 = vmax.f32 %v1992, 0.0
    %v2070 = vmax.f32 %v1657, 0.0
    %v2071 = vmax.f32 %v1659, 0.0
    %v2072 = vmax.f32 %v1996, 0.0
    %v2073 = vmax.f32 %v1998, 0.0
    %v2074 = vmax.f32 %v1661, 0.0
    %v2075 = vmax.f32 %v1663, 0.0
    %v2076 = vmax.f32 %v2000, 0.0
    %v2077 = vmax.f32 %v2002, 0.0
    %v2078 = vmax.f32 %v1667, 0.0
    %v2079 = vmax.f32 %v1669, 0.0
    %v2080 = vmax.f32 %v2006, 0.0
    %v2081 = vmax.f32 %v2008, 0.0
    %v2082 = vmax.f32 %v1671, 0.0
    %v2083 = vmax.f32 %v1673, 0.0
    %v2084 = vmax.f32 %v2010, 0.0
    %v2085 = vmax.f32 %v2012, 0.0
    %v2086 = vmax.f32 %v1677, 0.0
    %v2087 = vmax.f32 %v1679, 0.0
    %v2088 = vmax.f32 %v2016, 0.0
    %v2089 = vmax.f32 %v2018, 0.0
    %v2090 = vmax.f32 %v1681, 0.0
    %v2091 = vmax.f32 %v1683, 0.0
    %v2092 = vmax.f32 %v2020, 0.0
    %v2093 = vmax.f32 %v2022, 0.0
    %v2094 = vmax.f32 %v1687, 0.0
    %v2095 = vmax.f32 %v1689, 0.0
    %v2096 = vmax.f32 %v2026, 0.0
    %v2097 = vmax.f32 %v2028, 0.0
    %v2098 = vmax.f32 %v1691, 0.0
    %v2099 = vmax.f32 %v1693, 0.0
    %v2100 = vmax.f32 %v2030, 0.0
    %v2101 = vmax.f32 %v2032, 0.0
    %v2102 = vmax.f32 %v1697, 0.0
    %v2103 = vmax.f32 %v1699, 0.0
    %v2104 = vmax.f32 %v2036, 0.0
    %v2105 = vmax.f32 %v2038, 0.0
    %v2106 = vmax.f32 %v1701, 0.0
    %v2107 = vmax.f32 %v1703, 0.0
    %v2108 = vmax.f32 %v2040, 0.0
    %v2109 = vmax.f32 %v2042, 0.0
    %v2110 = vmax.f32 %v1707, 0.0
    %v2111 = vmax.f32 %v1709, 0.0
    %v2112 = vmax.f32 %v2046, 0.0
    %v2113 = vmax.f32 %v2048, 0.0
    %v2114 = vmax.f32 %v1711, 0.0
    %v2115 = vmax.f32 %v1713, 0.0
    %v2116 = vmax.f32 %v2050, 0.0
    %v2117 = vmax.f32 %v2052, 0.0
    %v2118 = vpack.c.bf16 %v2058, %v2054
    %v2119 = vpack.c.bf16 %v2059, %v2055
    %v2120 = vpack.c.bf16 %v2060, %v2056
    %v2121 = vpack.c.bf16 %v2061, %v2057
    %v2122 = vpack.c.bf16 %v2066, %v2062
    %v2123 = vpack.c.bf16 %v2067, %v2063
    %v2124 = vpack.c.bf16 %v2068, %v2064
    %v2125 = vpack.c.bf16 %v2069, %v2065
    %v2126 = vpack.c.bf16 %v2074, %v2070
    %v2127 = vpack.c.bf16 %v2075, %v2071
    %v2128 = vpack.c.bf16 %v2076, %v2072
    %v2129 = vpack.c.bf16 %v2077, %v2073
    %v2130 = vpack.c.bf16 %v2082, %v2078
    %v2131 = vpack.c.bf16 %v2083, %v2079
    %v2132 = vpack.c.bf16 %v2084, %v2080
    %v2133 = vpack.c.bf16 %v2085, %v2081
    %v2134 = vpack.c.bf16 %v2090, %v2086
    %v2135 = vpack.c.bf16 %v2091, %v2087
    %v2136 = vpack.c.bf16 %v2092, %v2088
    %v2137 = vpack.c.bf16 %v2093, %v2089
    %v2138 = vpack.c.bf16 %v2098, %v2094
    %v2139 = vpack.c.bf16 %v2099, %v2095
    %v2140 = vpack.c.bf16 %v2100, %v2096
    %v2141 = vpack.c.bf16 %v2101, %v2097
    %v2142 = vpack.c.bf16 %v2106, %v2102
    %v2143 = vpack.c.bf16 %v2107, %v2103
    %v2144 = vpack.c.bf16 %v2108, %v2104
    %v2145 = vpack.c.bf16 %v2109, %v2105
    %v2146 = vpack.c.bf16 %v2114, %v2110
    %v2147 = vpack.c.bf16 %v2115, %v2111
    %v2148 = vpack.c.bf16 %v2116, %v2112
    %v2149 = vpack.c.bf16 %v2117, %v2113
    %v2150 = vld [vmem:[%s3] sm:$0xf]
    %v2151 = vld [vmem:[%s3 + $0x4] sm:$0xf]
    %v2152 = vld [vmem:[%s3 + $0x8] sm:$0xf]
    %v2153 = vld [vmem:[%s3 + $0xc] sm:$0xf]
    %v2154 = vld [vmem:[%s3 + $0x10] sm:$0xf]
    %v2155 = vld [vmem:[%s3 + $0x14] sm:$0xf]
    %v2156 = vld [vmem:[%s3 + $0x18] sm:$0xf]
    %v2157 = vld [vmem:[%s3 + $0x1c] sm:$0xf]
    %v2158 = vld [vmem:[%s3 + $0x20] sm:$0xf]
    %v2159 = vld [vmem:[%s3 + $0x24] sm:$0xf]
    %v2160 = vld [vmem:[%s3 + $0x28] sm:$0xf]
    %v2161 = vld [vmem:[%s3 + $0x2c] sm:$0xf]
    %v2162 = vld [vmem:[%s3 + $0x30] sm:$0xf]
    %v2163 = vld [vmem:[%s3 + $0x34] sm:$0xf]
    %v2164 = vld [vmem:[%s3 + $0x38] sm:$0xf]
    %v2165 = vld [vmem:[%s3 + $0x3c] sm:$0xf]
    %v2166 = vld [vmem:[%s3 + $0x40] sm:$0xf]
    %v2167 = vld [vmem:[%s3 + $0x44] sm:$0xf]
    %v2168 = vld [vmem:[%s3 + $0x48] sm:$0xf]
    %v2169 = vld [vmem:[%s3 + $0x4c] sm:$0xf]
    %v2170 = vld [vmem:[%s3 + $0x50] sm:$0xf]
    %v2171 = vld [vmem:[%s3 + $0x54] sm:$0xf]
    %v2172 = vld [vmem:[%s3 + $0x58] sm:$0xf]
    %v2173 = vld [vmem:[%s3 + $0x5c] sm:$0xf]
    %v2174 = vld [vmem:[%s3 + $0x60] sm:$0xf]
    %v2175 = vld [vmem:[%s3 + $0x64] sm:$0xf]
    %v2176 = vld [vmem:[%s3 + $0x68] sm:$0xf]
    %v2177 = vld [vmem:[%s3 + $0x6c] sm:$0xf]
    %v2178 = vld [vmem:[%s3 + $0x70] sm:$0xf]
    %v2179 = vld [vmem:[%s3 + $0x74] sm:$0xf]
    %v2180 = vld [vmem:[%s3 + $0x78] sm:$0xf]
    %v2181 = vld [vmem:[%s3 + $0x7c] sm:$0xf]
    %v2182 = vld [vmem:[%s3 + $0x80] sm:$0xf]
    %v2183 = vld [vmem:[%s3 + $0x84] sm:$0xf]
    %v2184 = vld [vmem:[%s3 + $0x88] sm:$0xf]
    %v2185 = vld [vmem:[%s3 + $0x8c] sm:$0xf]
    %v2186 = vld [vmem:[%s3 + $0x90] sm:$0xf]
    %v2187 = vld [vmem:[%s3 + $0x94] sm:$0xf]
    %v2188 = vld [vmem:[%s3 + $0x98] sm:$0xf]
    %v2189 = vld [vmem:[%s3 + $0x9c] sm:$0xf]
    %v2190 = vld [vmem:[%s3 + $0xa0] sm:$0xf]
    %v2191 = vld [vmem:[%s3 + $0xa4] sm:$0xf]
    %v2192 = vld [vmem:[%s3 + $0xa8] sm:$0xf]
    %v2193 = vld [vmem:[%s3 + $0xac] sm:$0xf]
    %v2194 = vld [vmem:[%s3 + $0xb0] sm:$0xf]
    %v2195 = vld [vmem:[%s3 + $0xb4] sm:$0xf]
    %v2196 = vld [vmem:[%s3 + $0xb8] sm:$0xf]
    %v2197 = vld [vmem:[%s3 + $0xbc] sm:$0xf]
    %v2198 = vld [vmem:[%s3 + $0xc0] sm:$0xf]
    %v2199 = vld [vmem:[%s3 + $0xc4] sm:$0xf]
    %v2200 = vld [vmem:[%s3 + $0xc8] sm:$0xf]
    %v2201 = vld [vmem:[%s3 + $0xcc] sm:$0xf]
    %v2202 = vld [vmem:[%s3 + $0xd0] sm:$0xf]
    %v2203 = vld [vmem:[%s3 + $0xd4] sm:$0xf]
    %v2204 = vld [vmem:[%s3 + $0xd8] sm:$0xf]
    %v2205 = vld [vmem:[%s3 + $0xdc] sm:$0xf]
    %v2206 = vld [vmem:[%s3 + $0xe0] sm:$0xf]
    %v2207 = vld [vmem:[%s3 + $0xe4] sm:$0xf]
    %v2208 = vld [vmem:[%s3 + $0xe8] sm:$0xf]
    %v2209 = vld [vmem:[%s3 + $0xec] sm:$0xf]
    %v2210 = vld [vmem:[%s3 + $0xf0] sm:$0xf]
    %v2211 = vld [vmem:[%s3 + $0xf4] sm:$0xf]
    %v2212 = vld [vmem:[%s3 + $0xf8] sm:$0xf]
    %v2213 = vld [vmem:[%s3 + $0xfc] sm:$0xf]
    %v2214 = vld [vmem:[%s4] sm:$0x1]
    %v2216 = vlaneseq
    %v2217 = vshrl.u32 %v2216, 7
    %v2218 = vsub.s32 0, %v2217
    %v2219 = vrot.slane %v2214, %v2218
    %v2285 = vunpack.c.l.b16 %v2150
    %v2286 = vunpack.c.l.b16 %v2151
    %v2287 = vunpack.c.l.b16 %v2152
    %v2288 = vunpack.c.l.b16 %v2153
    %v2289 = vunpack.c.l.b16 %v2154
    %v2290 = vunpack.c.l.b16 %v2155
    %v2291 = vunpack.c.l.b16 %v2156
    %v2292 = vunpack.c.l.b16 %v2157
    %v2293 = vunpack.c.l.b16 %v2158
    %v2294 = vunpack.c.l.b16 %v2159
    %v2295 = vunpack.c.l.b16 %v2160
    %v2296 = vunpack.c.l.b16 %v2161
    %v2297 = vunpack.c.l.b16 %v2162
    %v2298 = vunpack.c.l.b16 %v2163
    %v2299 = vunpack.c.l.b16 %v2164
    %v2300 = vunpack.c.l.b16 %v2165
    %v2301 = vunpack.c.l.b16 %v2166
    %v2302 = vunpack.c.l.b16 %v2167
    %v2303 = vunpack.c.l.b16 %v2168
    %v2304 = vunpack.c.l.b16 %v2169
    %v2305 = vunpack.c.l.b16 %v2170
    %v2306 = vunpack.c.l.b16 %v2171
    %v2307 = vunpack.c.l.b16 %v2172
    %v2308 = vunpack.c.l.b16 %v2173
    %v2309 = vunpack.c.l.b16 %v2174
    %v2310 = vunpack.c.l.b16 %v2175
    %v2311 = vunpack.c.l.b16 %v2176
    %v2312 = vunpack.c.l.b16 %v2177
    %v2313 = vunpack.c.l.b16 %v2178
    %v2314 = vunpack.c.l.b16 %v2179
    %v2315 = vunpack.c.l.b16 %v2180
    %v2316 = vunpack.c.l.b16 %v2181
    %v2317 = vunpack.c.l.b16 %v2182
    %v2318 = vunpack.c.l.b16 %v2183
    %v2319 = vunpack.c.l.b16 %v2184
    %v2320 = vunpack.c.l.b16 %v2185
    %v2321 = vunpack.c.l.b16 %v2186
    %v2322 = vunpack.c.l.b16 %v2187
    %v2323 = vunpack.c.l.b16 %v2188
    %v2324 = vunpack.c.l.b16 %v2189
    %v2325 = vunpack.c.l.b16 %v2190
    %v2326 = vunpack.c.l.b16 %v2191
    %v2327 = vunpack.c.l.b16 %v2192
    %v2328 = vunpack.c.l.b16 %v2193
    %v2329 = vunpack.c.l.b16 %v2194
    %v2330 = vunpack.c.l.b16 %v2195
    %v2331 = vunpack.c.l.b16 %v2196
    %v2332 = vunpack.c.l.b16 %v2197
    %v2333 = vunpack.c.l.b16 %v2198
    %v2334 = vunpack.c.l.b16 %v2199
    %v2335 = vunpack.c.l.b16 %v2200
    %v2336 = vunpack.c.l.b16 %v2201
    %v2337 = vunpack.c.l.b16 %v2202
    %v2338 = vunpack.c.l.b16 %v2203
    %v2339 = vunpack.c.l.b16 %v2204
    %v2340 = vunpack.c.l.b16 %v2205
    %v2341 = vunpack.c.l.b16 %v2206
    %v2342 = vunpack.c.l.b16 %v2207
    %v2343 = vunpack.c.l.b16 %v2208
    %v2344 = vunpack.c.l.b16 %v2209
    %v2345 = vunpack.c.l.b16 %v2210
    %v2346 = vunpack.c.l.b16 %v2211
    %v2347 = vunpack.c.l.b16 %v2212
    %v2348 = vunpack.c.l.b16 %v2213
    %v2349 = vpack.c.b16 %v2286, %v2285
    %v2350 = vpack.c.b16 %v2288, %v2287
    %v2351 = vpack.c.b16 %v2290, %v2289
    %v2352 = vpack.c.b16 %v2292, %v2291
    %v2353 = vpack.c.b16 %v2294, %v2293
    %v2354 = vpack.c.b16 %v2296, %v2295
    %v2355 = vpack.c.b16 %v2298, %v2297
    %v2356 = vpack.c.b16 %v2300, %v2299
    %v2357 = vpack.c.b16 %v2302, %v2301
    %v2358 = vpack.c.b16 %v2304, %v2303
    %v2359 = vpack.c.b16 %v2306, %v2305
    %v2360 = vpack.c.b16 %v2308, %v2307
    %v2361 = vpack.c.b16 %v2310, %v2309
    %v2362 = vpack.c.b16 %v2312, %v2311
    %v2363 = vpack.c.b16 %v2314, %v2313
    %v2364 = vpack.c.b16 %v2316, %v2315
    %v2365 = vpack.c.b16 %v2318, %v2317
    %v2366 = vpack.c.b16 %v2320, %v2319
    %v2367 = vpack.c.b16 %v2322, %v2321
    %v2368 = vpack.c.b16 %v2324, %v2323
    %v2369 = vpack.c.b16 %v2326, %v2325
    %v2370 = vpack.c.b16 %v2328, %v2327
    %v2371 = vpack.c.b16 %v2330, %v2329
    %v2372 = vpack.c.b16 %v2332, %v2331
    %v2373 = vpack.c.b16 %v2334, %v2333
    %v2374 = vpack.c.b16 %v2336, %v2335
    %v2375 = vpack.c.b16 %v2338, %v2337
    %v2376 = vpack.c.b16 %v2340, %v2339
    %v2377 = vpack.c.b16 %v2342, %v2341
    %v2378 = vpack.c.b16 %v2344, %v2343
    %v2379 = vpack.c.b16 %v2346, %v2345
    %v2380 = vpack.c.b16 %v2348, %v2347
    %2413 = vmatprep.subr.bf16.mxu0 0
    %2414 = vmatpush1.bf16.msra.mxu0 %v2356
    %2415 = vmatprep.subr.bf16.mxu0 0
    %2416 = vmatpush1.bf16.msra.mxu0 %v2355
    %2417 = vmatprep.subr.bf16.mxu0 0
    %2418 = vmatpush1.bf16.msra.mxu0 %v2354
    %2419 = vmatprep.subr.bf16.mxu0 0
    %2420 = vmatpush1.bf16.msra.mxu0 %v2353
    %2421 = vmatprep.subr.bf16.mxu0 0
    %2422 = vmatpush1.bf16.msra.mxu0 %v2352
    %2423 = vmatprep.subr.bf16.mxu0 0
    %2424 = vmatpush1.bf16.msra.mxu0 %v2351
    %2425 = vmatprep.subr.bf16.mxu0 0
    %2426 = vmatpush1.bf16.msra.mxu0 %v2350
    %2427 = vmatprep.subr.bf16.mxu0 0
    %2428 = vmatpush1.bf16.msra.mxu0 %v2349
    %2429 = vmatprep.subr.bf16.mxu0 0
    %2430 = vmatpush2.bf16.msra.mxu0 %v2364
    %2431 = vmatprep.subr.bf16.mxu0 0
    %2432 = vmatpush2.bf16.msra.mxu0 %v2363
    %2433 = vmatprep.subr.bf16.mxu0 0
    %2434 = vmatpush2.bf16.msra.mxu0 %v2362
    %2435 = vmatprep.subr.bf16.mxu0 0
    %2436 = vmatpush2.bf16.msra.mxu0 %v2361
    %2437 = vmatprep.subr.bf16.mxu0 0
    %2438 = vmatpush2.bf16.msra.mxu0 %v2360
    %2439 = vmatprep.subr.bf16.mxu0 0
    %2440 = vmatpush2.bf16.msra.mxu0 %v2359
    %2441 = vmatprep.subr.bf16.mxu0 0
    %2442 = vmatpush2.bf16.msra.mxu0 %v2358
    %2443 = vmatprep.subr.bf16.mxu0 0
    %2444 = vmatpush2.bf16.msra.mxu0 %v2357
    %2445 = vmatprep.mubr.bf16.mxu0 %v2119
    %2446 = vmatmul.mubr.bf16.gmra.mxu0 %v2118
    %v2447 = vpop.f32.mrf.mxu0
    %v2448 = vadd.f32 %v2219, %v2447
    %v2449 = vpop.f32.mrf.mxu0
    %v2450 = vpop.f32.mrf.mxu0
    %v2451 = vadd.f32 %v2219, %v2450
    %v2452 = vpop.f32.mrf.mxu0
    %2453 = vmatprep.mubr.bf16.mxu0 %v2123
    %2454 = vmatmul.mubr.bf16.gmra.mxu0 %v2122
    %v2455 = vpop.f32.mrf.mxu0
    %v2456 = vadd.f32 %v2219, %v2455
    %v2457 = vpop.f32.mrf.mxu0
    %v2458 = vpop.f32.mrf.mxu0
    %v2459 = vadd.f32 %v2219, %v2458
    %v2460 = vpop.f32.mrf.mxu0
    %2461 = vmatprep.mubr.bf16.mxu0 %v2127
    %2462 = vmatmul.mubr.bf16.gmra.mxu0 %v2126
    %v2463 = vpop.f32.mrf.mxu0
    %v2464 = vadd.f32 %v2219, %v2463
    %v2465 = vpop.f32.mrf.mxu0
    %v2466 = vpop.f32.mrf.mxu0
    %v2467 = vadd.f32 %v2219, %v2466
    %v2468 = vpop.f32.mrf.mxu0
    %2469 = vmatprep.mubr.bf16.mxu0 %v2131
    %2470 = vmatmul.mubr.bf16.gmra.mxu0 %v2130
    %v2471 = vpop.f32.mrf.mxu0
    %v2472 = vadd.f32 %v2219, %v2471
    %v2473 = vpop.f32.mrf.mxu0
    %v2474 = vpop.f32.mrf.mxu0
    %v2475 = vadd.f32 %v2219, %v2474
    %v2476 = vpop.f32.mrf.mxu0
    %2477 = vmatprep.mubr.bf16.mxu0 %v2135
    %2478 = vmatmul.mubr.bf16.gmra.mxu0 %v2134
    %v2479 = vpop.f32.mrf.mxu0
    %v2480 = vadd.f32 %v2219, %v2479
    %v2481 = vpop.f32.mrf.mxu0
    %v2482 = vpop.f32.mrf.mxu0
    %v2483 = vadd.f32 %v2219, %v2482
    %v2484 = vpop.f32.mrf.mxu0
    %2485 = vmatprep.mubr.bf16.mxu0 %v2139
    %2486 = vmatmul.mubr.bf16.gmra.mxu0 %v2138
    %v2487 = vpop.f32.mrf.mxu0
    %v2488 = vadd.f32 %v2219, %v2487
    %v2489 = vpop.f32.mrf.mxu0
    %v2490 = vpop.f32.mrf.mxu0
    %v2491 = vadd.f32 %v2219, %v2490
    %v2492 = vpop.f32.mrf.mxu0
    %2493 = vmatprep.mubr.bf16.mxu0 %v2143
    %2494 = vmatmul.mubr.bf16.gmra.mxu0 %v2142
    %v2495 = vpop.f32.mrf.mxu0
    %v2496 = vadd.f32 %v2219, %v2495
    %v2497 = vpop.f32.mrf.mxu0
    %v2498 = vpop.f32.mrf.mxu0
    %v2499 = vadd.f32 %v2219, %v2498
    %v2500 = vpop.f32.mrf.mxu0
    %2501 = vmatprep.mubr.bf16.mxu0 %v2147
    %2502 = vmatmul.mubr.bf16.gmra.mxu0 %v2146
    %v2503 = vpop.f32.mrf.mxu0
    %v2504 = vadd.f32 %v2219, %v2503
    %v2505 = vpop.f32.mrf.mxu0
    %v2506 = vpop.f32.mrf.mxu0
    %v2507 = vadd.f32 %v2219, %v2506
    %v2508 = vpop.f32.mrf.mxu0
    %2509 = vdwg.mxu0
    %2510 = vmatprep.subr.bf16.mxu0 0
    %2511 = vmatpush1.bf16.msra.mxu0 %v2372
    %2512 = vmatprep.subr.bf16.mxu0 0
    %2513 = vmatpush1.bf16.msra.mxu0 %v2371
    %2514 = vmatprep.subr.bf16.mxu0 0
    %2515 = vmatpush1.bf16.msra.mxu0 %v2370
    %2516 = vmatprep.subr.bf16.mxu0 0
    %2517 = vmatpush1.bf16.msra.mxu0 %v2369
    %2518 = vmatprep.subr.bf16.mxu0 0
    %2519 = vmatpush1.bf16.msra.mxu0 %v2368
    %2520 = vmatprep.subr.bf16.mxu0 0
    %2521 = vmatpush1.bf16.msra.mxu0 %v2367
    %2522 = vmatprep.subr.bf16.mxu0 0
    %2523 = vmatpush1.bf16.msra.mxu0 %v2366
    %2524 = vmatprep.subr.bf16.mxu0 0
    %2525 = vmatpush1.bf16.msra.mxu0 %v2365
    %2526 = vmatprep.subr.bf16.mxu0 0
    %2527 = vmatpush2.bf16.msra.mxu0 %v2380
    %2528 = vmatprep.subr.bf16.mxu0 0
    %2529 = vmatpush2.bf16.msra.mxu0 %v2379
    %2530 = vmatprep.subr.bf16.mxu0 0
    %2531 = vmatpush2.bf16.msra.mxu0 %v2378
    %2532 = vmatprep.subr.bf16.mxu0 0
    %2533 = vmatpush2.bf16.msra.mxu0 %v2377
    %2534 = vmatprep.subr.bf16.mxu0 0
    %2535 = vmatpush2.bf16.msra.mxu0 %v2376
    %2536 = vmatprep.subr.bf16.mxu0 0
    %2537 = vmatpush2.bf16.msra.mxu0 %v2375
    %2538 = vmatprep.subr.bf16.mxu0 0
    %2539 = vmatpush2.bf16.msra.mxu0 %v2374
    %2540 = vmatprep.subr.bf16.mxu0 0
    %2541 = vmatpush2.bf16.msra.mxu0 %v2373
    %2542 = vmatprep.mubr.bf16.mxu0 %v2121
    %2543 = vmatmul.mubr.bf16.gmra.mxu0 %v2120
    %v2544 = vpop.f32.mrf.mxu0
    %v2545 = vadd.f32 %v2448, %v2544
    %v2546 = vpop.f32.mrf.mxu0
    %v2547 = vpop.f32.mrf.mxu0
    %v2548 = vadd.f32 %v2451, %v2547
    %v2549 = vpop.f32.mrf.mxu0
    %2550 = vmatprep.mubr.bf16.mxu0 %v2125
    %2551 = vmatmul.mubr.bf16.gmra.mxu0 %v2124
    %v2552 = vpop.f32.mrf.mxu0
    %v2553 = vadd.f32 %v2456, %v2552
    %v2554 = vpop.f32.mrf.mxu0
    %v2555 = vpop.f32.mrf.mxu0
    %v2556 = vadd.f32 %v2459, %v2555
    %v2557 = vpop.f32.mrf.mxu0
    %2558 = vmatprep.mubr.bf16.mxu0 %v2129
    %2559 = vmatmul.mubr.bf16.gmra.mxu0 %v2128
    %v2560 = vpop.f32.mrf.mxu0
    %v2561 = vadd.f32 %v2464, %v2560
    %v2562 = vpop.f32.mrf.mxu0
    %v2563 = vpop.f32.mrf.mxu0
    %v2564 = vadd.f32 %v2467, %v2563
    %v2565 = vpop.f32.mrf.mxu0
    %2566 = vmatprep.mubr.bf16.mxu0 %v2133
    %2567 = vmatmul.mubr.bf16.gmra.mxu0 %v2132
    %v2568 = vpop.f32.mrf.mxu0
    %v2569 = vadd.f32 %v2472, %v2568
    %v2570 = vpop.f32.mrf.mxu0
    %v2571 = vpop.f32.mrf.mxu0
    %v2572 = vadd.f32 %v2475, %v2571
    %v2573 = vpop.f32.mrf.mxu0
    %2574 = vmatprep.mubr.bf16.mxu0 %v2137
    %2575 = vmatmul.mubr.bf16.gmra.mxu0 %v2136
    %v2576 = vpop.f32.mrf.mxu0
    %v2577 = vadd.f32 %v2480, %v2576
    %v2578 = vpop.f32.mrf.mxu0
    %v2579 = vpop.f32.mrf.mxu0
    %v2580 = vadd.f32 %v2483, %v2579
    %v2581 = vpop.f32.mrf.mxu0
    %2582 = vmatprep.mubr.bf16.mxu0 %v2141
    %2583 = vmatmul.mubr.bf16.gmra.mxu0 %v2140
    %v2584 = vpop.f32.mrf.mxu0
    %v2585 = vadd.f32 %v2488, %v2584
    %v2586 = vpop.f32.mrf.mxu0
    %v2587 = vpop.f32.mrf.mxu0
    %v2588 = vadd.f32 %v2491, %v2587
    %v2589 = vpop.f32.mrf.mxu0
    %2590 = vmatprep.mubr.bf16.mxu0 %v2145
    %2591 = vmatmul.mubr.bf16.gmra.mxu0 %v2144
    %v2592 = vpop.f32.mrf.mxu0
    %v2593 = vadd.f32 %v2496, %v2592
    %v2594 = vpop.f32.mrf.mxu0
    %v2595 = vpop.f32.mrf.mxu0
    %v2596 = vadd.f32 %v2499, %v2595
    %v2597 = vpop.f32.mrf.mxu0
    %2598 = vmatprep.mubr.bf16.mxu0 %v2149
    %2599 = vmatmul.mubr.bf16.gmra.mxu0 %v2148
    %v2600 = vpop.f32.mrf.mxu0
    %v2601 = vadd.f32 %v2504, %v2600
    %v2602 = vpop.f32.mrf.mxu0
    %v2603 = vpop.f32.mrf.mxu0
    %v2604 = vadd.f32 %v2507, %v2603
    %v2605 = vpop.f32.mrf.mxu0
    %2606 = vdwg.mxu0
    %v2607 = vmax.f32 %v2545, 0.0
    %v2608 = vmax.f32 %v2548, 0.0
    %v2609 = vmax.f32 %v2553, 0.0
    %v2610 = vmax.f32 %v2556, 0.0
    %v2611 = vmax.f32 %v2561, 0.0
    %v2612 = vmax.f32 %v2564, 0.0
    %v2613 = vmax.f32 %v2569, 0.0
    %v2614 = vmax.f32 %v2572, 0.0
    %v2615 = vmax.f32 %v2577, 0.0
    %v2616 = vmax.f32 %v2580, 0.0
    %v2617 = vmax.f32 %v2585, 0.0
    %v2618 = vmax.f32 %v2588, 0.0
    %v2619 = vmax.f32 %v2593, 0.0
    %v2620 = vmax.f32 %v2596, 0.0
    %v2621 = vmax.f32 %v2601, 0.0
    %v2622 = vmax.f32 %v2604, 0.0
    %v2623 = vld [vmem:[%s5] sm:$0xf]
    %v2624 = vpack.c.bf16 %v2608, %v2607
    %v2625 = vpack.c.bf16 %v2610, %v2609
    %v2626 = vpack.c.bf16 %v2612, %v2611
    %v2627 = vpack.c.bf16 %v2614, %v2613
    %v2628 = vpack.c.bf16 %v2616, %v2615
    %v2629 = vpack.c.bf16 %v2618, %v2617
    %v2630 = vpack.c.bf16 %v2620, %v2619
    %v2631 = vpack.c.bf16 %v2622, %v2621
    %vm2632 = vcmask 261120
    %v2634 = vsel %vm2632, %v2623, 0
    %v2637 = vsel %vm2632, %v2624, 0
    %v2640 = vsel %vm2632, %v2625, 0
    %v2643 = vsel %vm2632, %v2626, 0
    %v2646 = vsel %vm2632, %v2627, 0
    %v2649 = vsel %vm2632, %v2628, 0
    %v2652 = vsel %vm2632, %v2629, 0
    %v2655 = vsel %vm2632, %v2630, 0
    %v2658 = vsel %vm2632, %v2631, 0
    %2660 = vmatprep.subr.bf16.mxu0 0
    %2661 = vmatpush1.bf16.xpose.msra.mxu0 %v2658
    %2662 = vmatprep.subr.bf16.mxu0 0
    %2663 = vmatpush1.bf16.xpose.msra.mxu0 %v2655
    %2664 = vmatprep.subr.bf16.mxu0 0
    %2665 = vmatpush1.bf16.xpose.msra.mxu0 %v2652
    %2666 = vmatprep.subr.bf16.mxu0 0
    %2667 = vmatpush1.bf16.xpose.msra.mxu0 %v2649
    %2668 = vmatprep.subr.bf16.mxu0 0
    %2669 = vmatpush1.bf16.xpose.msra.mxu0 %v2646
    %2670 = vmatprep.subr.bf16.mxu0 0
    %2671 = vmatpush1.bf16.xpose.msra.mxu0 %v2643
    %2672 = vmatprep.subr.bf16.mxu0 0
    %2673 = vmatpush1.bf16.xpose.msra.mxu0 %v2640
    %2674 = vmatprep.subr.bf16.mxu0 0
    %2675 = vmatpush1.bf16.xpose.msra.mxu0 %v2637
    %2676 = vmatprep.subr.bf16.mxu0 0
    %2677 = vmatpush2.bf16.xpose.msra.mxu0 0
    %2678 = vmatprep.subr.bf16.mxu0 0
    %2679 = vmatpush2.bf16.xpose.msra.mxu0 0
    %2680 = vmatprep.subr.bf16.mxu0 0
    %2681 = vmatpush2.bf16.xpose.msra.mxu0 0
    %2682 = vmatprep.subr.bf16.mxu0 0
    %2683 = vmatpush2.bf16.xpose.msra.mxu0 0
    %2684 = vmatprep.subr.bf16.mxu0 0
    %2685 = vmatpush2.bf16.xpose.msra.mxu0 0
    %2686 = vmatprep.subr.bf16.mxu0 0
    %2687 = vmatpush2.bf16.xpose.msra.mxu0 0
    %2688 = vmatprep.subr.bf16.mxu0 0
    %2689 = vmatpush2.bf16.xpose.msra.mxu0 0
    %2690 = vmatprep.subr.bf16.mxu0 0
    %2691 = vmatpush2.bf16.xpose.msra.mxu0 0
    %2692 = vmatprep.mubr.bf16.mxu0 0
    %2693 = vmatmul.mubr.bf16.gmra.mxu0 %v2634
    %v2694 = vpop.f32.mrf.mxu0
    %v2695 = vadd.f32 0.0, %v2694
    %v2696 = vpop.f32.mrf.mxu0
    %v2697 = vpop.f32.mrf.mxu0
    %v2698 = vpop.f32.mrf.mxu0
    %2699 = vdwg.mxu0
    %v2700 = vld [vmem:[#allocation2] sm:$0x1]
    %2702 = vset.pattern.permute.xlu0 0
    %2703 = vperm.xlu0 %2702, %v2700
    %v2704 = vpop.permute.xlu0 %2703
    %v2706 = vlaneseq
    %v2707 = vshrl.u32 %v2706, 7
    %v2708 = vsub.s32 0, %v2707
    %v2709 = vrot.slane %v2704, %v2708
    %v2710 = vadd.f32 %v2695, %v2709
    %2711 = vst [vmem:[#allocation8] sm:$0x1] %v2710
    // Predicated region
    $region38: #{tpu_custom_call.1} parent=1 // pred_check
      _
    $region39: #{tpu_custom_call.1} parent=1 // pred_check_branch
      %2713 = sbr.rel (0) target = $region41
    $region40: #{tpu_custom_call.1} parent=1 // pred_region
      %s2715 = ssub.s32 16, 16
      %2716 = vsyncadd [#allocation5], %s2715
      %s2718 = sshll.u32 [#allocation8], 4
      %s2719 = int_to_ptr.vmem [resolvable:$true] %s2718
      %2721 = dma.vmem_to_hbm [thread:$0]  %s2719, 16, %s7, [#allocation5]
    $region41: #{tpu_custom_call.1} parent=1 // pred_fallthru
      _
    // Predicated region
    $region42: #{tpu_custom_call.1} parent=1 // pred_check
      _
    $region43: #{tpu_custom_call.1} parent=1 // pred_check_branch
      %2723 = sbr.rel (0) target = $region45
    $region44: #{tpu_custom_call.1} parent=1 // pred_region
      %2724 = dma.done [#allocation5], 16
    $region45: #{tpu_custom_call.1} parent=1 // pred_fallthru
      _
    %2725 = vsyncpa [#allocation4], 1
    %2726 = vsyncpa [#allocation7], 1
    %2727 = vsyncpa [#allocation5], 1

</llo_original>
